<compile_context>
chip_gen: v6e
topology: v6e:2x2x1
jax: 0.10.0
libtpu: 0.0.40
codegen_flags: <defaults>
</compile_context>

<pallas_src>
import jax
import jax.numpy as jnp
import numpy as np
from jax.experimental import pallas as pl
from jax.experimental.pallas import tpu as pltpu

_EPS = 1e-5


def _pick_vmem_limit():
    """Generation-aware scoped-VMEM request (leave headroom for the compiler)."""
    cap = 128 * 1024 * 1024
    try:
        info = pltpu.get_tpu_info()
        cap = int(getattr(info, "vmem_capacity_bytes", cap))
    except Exception:
        pass
    # 3/4 of physical, capped at 96 MiB: v7x (64 MiB) -> 48 MiB, v5e/v6e -> 96 MiB.
    return int(min(96 * 1024 * 1024, (cap * 3) // 4))


_VMEM_LIMIT = _pick_vmem_limit()


def _pick_tco(H, W, Cin, cout_pad, vmem_limit):
    """Choose the Cout tile: 256 where the per-step footprint clearly fits."""
    def footprint(tco):
        f = 0
        f += 2 * (H + 2) * (W + 2) * Cin * 4      # f32 input block, double-buffered
        f += 2 * 2 * 2 * 4 * Cin * tco * 2        # bf16 weight slabs, double-buffered
        f += 2 * 4 * H * W * tco * 2              # bf16 output block, double-buffered
        f += 9 * H * W * Cin * 2                  # deduped bf16 windows
        f += 2 * H * W * 4 * Cin * 2              # live bf16 im2col patches
        f += 4 * H * W * tco * 4                  # f32 parity accumulators
        f += 2 * 4 * H * W * tco * 4              # interleave temporaries
        return f

    if cout_pad % 256 == 0 and footprint(256) <= int(0.6 * vmem_limit):
        return 256
    return 128


def _make_unet_up_kernel(H, W, Cin, TCo, eps=_EPS):
    """Fused ConvTranspose2d(4,2,1) + InstanceNorm2d + ReLU.

    One grid step = one batch element x one Cout tile.

    Refs:
      xp_ref : (1, H+2, W+2, Cin)   f32   zero-padded NHWC input (one batch)
      w_ref  : (2, 2, 4*Cin, TCo)   bf16  per-parity K-fused weight slabs
      o_ref  : (1, 2H, 2W, TCo)     bf16  pixel-shuffled NHWC output tile
    """
    HW = H * W
    K = 4 * Cin
    inv_n = 1.0 / float(4 * HW)

    def kernel(xp_ref, w_ref, o_ref):
        xp = xp_ref[0]                       # (H+2, W+2, Cin) f32

        # --- dedupe the 9 shifted halo windows, bf16-cast each exactly once --
        win = {}
        for r in range(3):
            for c in range(3):
                win[(r, c)] = xp[r:r + H, c:c + W, :].astype(jnp.bfloat16)

        # --- transposed conv via sub-pixel decomposition ---------------------
        # One MXU matmul per output parity (py, px): im2col the 2x2 sub-stencil
        # along channels (K = 4*Cin) and multiply by the pre-packed bf16 slab.
        accs = []
        s1 = jnp.zeros((1, TCo), jnp.float32)   # per-channel sum
        s2 = jnp.zeros((1, TCo), jnp.float32)   # per-channel sum of squares
        for py in range(2):
            for px in range(2):
                parts = [win[(dy + py, dx + px)]
                         for dy in range(2) for dx in range(2)]
                patch = jnp.concatenate(parts, axis=-1).reshape(HW, K)  # bf16
                acc = jnp.dot(patch, w_ref[py, px],
                              preferred_element_type=jnp.float32)       # (HW, TCo) f32
                # one-pass InstanceNorm statistics (f32)
                s1 = s1 + jnp.sum(acc, axis=0, keepdims=True)
                s2 = s2 + jnp.sum(acc * acc, axis=0, keepdims=True)
                accs.append(acc)

        # --- InstanceNorm2d (biased variance, no affine) ----------------------
        mean = s1 * inv_n
        var = s2 * inv_n - mean * mean
        inv = jax.lax.rsqrt(var + eps)

        # --- normalize + ReLU -------------------------------------------------
        ys = [jnp.maximum((a - mean) * inv, 0.0).reshape(H, W, TCo) for a in accs]

        # --- in-register pixel shuffle + ONE dense store ----------------------
        # px interleave: lane concat (H, W, 2*TCo) -> reshape (H, 2W, TCo)
        row0 = jnp.concatenate([ys[0], ys[1]], axis=-1).reshape(H, 2 * W, TCo)
        row1 = jnp.concatenate([ys[2], ys[3]], axis=-1).reshape(H, 2 * W, TCo)
        # py interleave: sublane-axis concat (H, 4W, TCo) -> reshape (2H, 2W, TCo)
        out = jnp.concatenate([row0, row1], axis=1).reshape(2 * H, 2 * W, TCo)
        o_ref[0] = out.astype(o_ref.dtype)

    return kernel


@jax.jit
def unet_up_forward(x_nchw, skip_nchw, weight):
    """UNetUp forward.
      x_nchw    : (N, Cin, H, W)
      skip_nchw : (N, Cs, 2H, 2W)
      weight    : (Cin, Cout, 4, 4)   PyTorch ConvTranspose2d layout
    Returns (N, Cout + Cs, 2H, 2W) float32.
    """
    N, Cin, H, W = x_nchw.shape
    Cout = weight.shape[1]

    # Lane-dense channels: pad Cout to a multiple of 128 (zero weights -> zero
    # activations -> zero after norm/ReLU); pad stripped below.
    Cout_pad = ((Cout + 127) // 128) * 128
    TCo = _pick_tco(H, W, Cin, Cout_pad, _VMEM_LIMIT)
    n_co = Cout_pad // TCo

    # Interface glue: NCHW -> NHWC + halo pad (fused by XLA into one input pass).
    x = jnp.transpose(x_nchw, (0, 2, 3, 1)).astype(jnp.float32)
    xp = jnp.pad(x, ((0, 0), (1, 1), (1, 1), (0, 0)))

    # Pack the 4x4 transposed-conv weight into per-parity K-fused bf16 slabs:
    #   slab[py, px] = concat_{(dy,dx)} w[3-py-2*dy, 3-px-2*dx]   -> (4*Cin, Cout_pad)
    # (order matches the patch concat inside the kernel).  Tiny; done once.
    w_pad = jnp.pad(weight.astype(jnp.float32),
                    ((0, 0), (0, Cout_pad - Cout), (0, 0), (0, 0)))
    w = jnp.transpose(w_pad, (2, 3, 0, 1))           # (ky, kx, Cin, Cout_pad)
    slabs = []
    for py in range(2):
        row = []
        for px in range(2):
            parts = [w[3 - py - 2 * dy, 3 - px - 2 * dx]
                     for dy in range(2) for dx in range(2)]
            row.append(jnp.concatenate(parts, axis=0))        # (4*Cin, Cout_pad)
        slabs.append(jnp.stack(row, axis=0))
    w_slab = jnp.stack(slabs, axis=0).astype(jnp.bfloat16)    # (2,2,4*Cin,Cout_pad)

    kernel = _make_unet_up_kernel(H, W, Cin, TCo)

    y = pl.pallas_call(
        kernel,
        out_shape=jax.ShapeDtypeStruct((N, 2 * H, 2 * W, Cout_pad), jnp.bfloat16),
        grid=(N, n_co),
        in_specs=[
            # input block does not depend on the Cout-tile index -> Pallas
            # skips re-fetching it across consecutive co steps.
            pl.BlockSpec((1, H + 2, W + 2, Cin), lambda b, c: (b, 0, 0, 0)),
            pl.BlockSpec((2, 2, 4 * Cin, TCo), lambda b, c: (0, 0, 0, c)),
        ],
        out_specs=pl.BlockSpec((1, 2 * H, 2 * W, TCo),
                               lambda b, c: (b, 0, 0, c)),
        compiler_params=pltpu.CompilerParams(
            dimension_semantics=("parallel", "parallel"),
            vmem_limit_bytes=_VMEM_LIMIT,
        ),
    )(xp, w_slab)

    # Interface glue back to NCHW + channel concat with the skip connection
    # (pad channels stripped here).  Kept because the module's interface is
    # NCHW; the bf16 kernel output halves this pass's read traffic.  In an
    # NHWC end-to-end model the kernel could write into the concat buffer
    # directly and this pass would disappear.
    y_nchw = jnp.transpose(y[..., :Cout], (0, 3, 1, 2)).astype(jnp.float32)
    return jnp.concatenate([y_nchw, skip_nchw.astype(jnp.float32)], axis=1)


def _reference(x, skip, w, eps=_EPS):
    """Pure-numpy reference matching PyTorch UNetUp.forward semantics."""
    x = np.asarray(x, np.float64)
    w = np.asarray(w, np.float64)
    N, Cin, H, W = x.shape
    Cout = w.shape[1]
    full = np.zeros((N, Cout, 2 * H + 2, 2 * W + 2))
    for ky in range(4):
        for kx in range(4):
            contrib = np.einsum("nchw,cd->ndhw", x, w[:, :, ky, kx])
            full[:, :, ky:ky + 2 * H:2, kx:kx + 2 * W:2] += contrib
    y = full[:, :, 1:1 + 2 * H, 1:1 + 2 * W]           # crop padding=1
    mean = y.mean(axis=(2, 3), keepdims=True)
    var = y.var(axis=(2, 3), keepdims=True)            # biased, like PyTorch
    y = np.maximum((y - mean) / np.sqrt(var + eps), 0.0)
    return np.concatenate([y, np.asarray(skip, np.float64)], axis=1)


if __name__ == "__main__":
    # small deterministic shapes: UNetUp(in_size=8, out_size=4), H=W=8
    N, IN_SIZE, OUT_SIZE, H, W = 2, 8, 4, 8, 8
    SKIP_C = OUT_SIZE  # typical pix2pix skip connection

    key = jax.random.PRNGKey(0)
    kx, ks, kw = jax.random.split(key, 3)
    x = jax.random.normal(kx, (N, IN_SIZE, H, W), jnp.float32)
    skip = jax.random.normal(ks, (N, SKIP_C, 2 * H, 2 * W), jnp.float32)
    # deterministic "parameters": ConvTranspose2d weight (in, out, 4, 4)
    weight = 0.1 * jax.random.normal(kw, (IN_SIZE, OUT_SIZE, 4, 4), jnp.float32)

    out = jax.block_until_ready(unet_up_forward(x, skip, weight))

    ref = _reference(np.asarray(x), np.asarray(skip), np.asarray(weight))
    assert out.shape == (N, OUT_SIZE + SKIP_C, 2 * H, 2 * W), out.shape
    # bf16 MXU operands + bf16 kernel output -> loosened tolerance
    # (accumulation, statistics and normalization stay f32).
    np.testing.assert_allclose(np.asarray(out), ref, rtol=3e-2, atol=3e-2)

    print("KERNEL_OK")
</pallas_src>

<mosaic_0001>
module attributes {stable_mosaic.version = 11 : i64} {
  func.func @kernel(%arg0: i32, %arg1: i32, %arg2: memref<1x10x10x8xf32, #tpu.memory_space<vmem>>, %arg3: memref<2x2x32x128xbf16, #tpu.memory_space<vmem>>, %arg4: memref<1x16x16x128xbf16, #tpu.memory_space<vmem>>) attributes {dimension_semantics = [#tpu.dimension_semantics<parallel>, #tpu.dimension_semantics<parallel>], iteration_bounds = array<i64: 2, 1>, scalar_prefetch = 0 : i64, scratch_operands = 0 : i64, tpu.core_type = #tpu.core_type<tc>, window_params = [{transform_indices = @transform_0, window_bounds = array<i64: 1, 10, 10, 8>}, {transform_indices = @transform_1, window_bounds = array<i64: 2, 2, 32, 128>}, {transform_indices = @transform_2, window_bounds = array<i64: 1, 16, 16, 128>}]} {
    %c0 = arith.constant 0 : index
    %c0_0 = arith.constant 0 : index
    %c0_1 = arith.constant 0 : index
    %c0_2 = arith.constant 0 : index
    %0 = vector.load %arg2[%c0, %c0_0, %c0_1, %c0_2] : memref<1x10x10x8xf32, #tpu.memory_space<vmem>>, vector<1x10x10x8xf32>
    %1 = vector.shape_cast %0 : vector<1x10x10x8xf32> to vector<10x10x8xf32>
    %2 = vector.extract_strided_slice %1 {offsets = [0, 0, 0], sizes = [8, 8, 8], strides = [1, 1, 1]} : vector<10x10x8xf32> to vector<8x8x8xf32>
    %3 = arith.truncf %2 : vector<8x8x8xf32> to vector<8x8x8xbf16>
    %4 = vector.extract_strided_slice %1 {offsets = [0, 1, 0], sizes = [8, 8, 8], strides = [1, 1, 1]} : vector<10x10x8xf32> to vector<8x8x8xf32>
    %5 = arith.truncf %4 : vector<8x8x8xf32> to vector<8x8x8xbf16>
    %6 = vector.extract_strided_slice %1 {offsets = [0, 2, 0], sizes = [8, 8, 8], strides = [1, 1, 1]} : vector<10x10x8xf32> to vector<8x8x8xf32>
    %7 = arith.truncf %6 : vector<8x8x8xf32> to vector<8x8x8xbf16>
    %8 = vector.extract_strided_slice %1 {offsets = [1, 0, 0], sizes = [8, 8, 8], strides = [1, 1, 1]} : vector<10x10x8xf32> to vector<8x8x8xf32>
    %9 = arith.truncf %8 : vector<8x8x8xf32> to vector<8x8x8xbf16>
    %10 = vector.extract_strided_slice %1 {offsets = [1, 1, 0], sizes = [8, 8, 8], strides = [1, 1, 1]} : vector<10x10x8xf32> to vector<8x8x8xf32>
    %11 = arith.truncf %10 : vector<8x8x8xf32> to vector<8x8x8xbf16>
    %12 = vector.extract_strided_slice %1 {offsets = [1, 2, 0], sizes = [8, 8, 8], strides = [1, 1, 1]} : vector<10x10x8xf32> to vector<8x8x8xf32>
    %13 = arith.truncf %12 : vector<8x8x8xf32> to vector<8x8x8xbf16>
    %14 = vector.extract_strided_slice %1 {offsets = [2, 0, 0], sizes = [8, 8, 8], strides = [1, 1, 1]} : vector<10x10x8xf32> to vector<8x8x8xf32>
    %15 = arith.truncf %14 : vector<8x8x8xf32> to vector<8x8x8xbf16>
    %16 = vector.extract_strided_slice %1 {offsets = [2, 1, 0], sizes = [8, 8, 8], strides = [1, 1, 1]} : vector<10x10x8xf32> to vector<8x8x8xf32>
    %17 = arith.truncf %16 : vector<8x8x8xf32> to vector<8x8x8xbf16>
    %18 = vector.extract_strided_slice %1 {offsets = [2, 2, 0], sizes = [8, 8, 8], strides = [1, 1, 1]} : vector<10x10x8xf32> to vector<8x8x8xf32>
    %19 = arith.truncf %18 : vector<8x8x8xf32> to vector<8x8x8xbf16>
    %cst = arith.constant 0.000000e+00 : f32
    %20 = vector.broadcast %cst : f32 to vector<1x128xf32>
    %cst_3 = arith.constant 0.000000e+00 : f32
    %21 = vector.broadcast %cst_3 : f32 to vector<1x128xf32>
    %22 = tpu.concatenate %3, %5, %9, %11 in 2 : vector<8x8x8xbf16>, vector<8x8x8xbf16>, vector<8x8x8xbf16>, vector<8x8x8xbf16> -> vector<8x8x32xbf16>
    %23 = vector.shape_cast %22 : vector<8x8x32xbf16> to vector<64x32xbf16>
    %c0_4 = arith.constant 0 : index
    %c0_5 = arith.constant 0 : index
    %c0_6 = arith.constant 0 : index
    %c0_7 = arith.constant 0 : index
    %24 = vector.load %arg3[%c0_4, %c0_5, %c0_6, %c0_7] : memref<2x2x32x128xbf16, #tpu.memory_space<vmem>>, vector<1x1x32x128xbf16>
    %25 = vector.shape_cast %24 : vector<1x1x32x128xbf16> to vector<32x128xbf16>
    %cst_8 = arith.constant dense<0.000000e+00> : vector<64x128xf32>
    %26 = tpu.matmul %23, %25, %cst_8 {dimension_numbers = #tpu.dot_dimension_numbers<[1], [0], [0], [1], [0, 0, 1, 1], [], []>} : vector<64x32xbf16>, vector<32x128xbf16>, vector<64x128xf32> -> vector<64x128xf32>
    %cst_9 = arith.constant dense<0.000000e+00> : vector<128xf32>
    %27 = vector.multi_reduction <add>, %26, %cst_9 [0] : vector<64x128xf32> to vector<128xf32>
    %28 = vector.shape_cast %27 : vector<128xf32> to vector<1x128xf32>
    %29 = arith.addf %20, %28 : vector<1x128xf32>
    %30 = arith.mulf %26, %26 : vector<64x128xf32>
    %cst_10 = arith.constant dense<0.000000e+00> : vector<128xf32>
    %31 = vector.multi_reduction <add>, %30, %cst_10 [0] : vector<64x128xf32> to vector<128xf32>
    %32 = vector.shape_cast %31 : vector<128xf32> to vector<1x128xf32>
    %33 = arith.addf %21, %32 : vector<1x128xf32>
    %34 = tpu.concatenate %5, %7, %11, %13 in 2 : vector<8x8x8xbf16>, vector<8x8x8xbf16>, vector<8x8x8xbf16>, vector<8x8x8xbf16> -> vector<8x8x32xbf16>
    %35 = vector.shape_cast %34 : vector<8x8x32xbf16> to vector<64x32xbf16>
    %c0_11 = arith.constant 0 : index
    %c1 = arith.constant 1 : index
    %c0_12 = arith.constant 0 : index
    %c0_13 = arith.constant 0 : index
    %36 = vector.load %arg3[%c0_11, %c1, %c0_12, %c0_13] : memref<2x2x32x128xbf16, #tpu.memory_space<vmem>>, vector<1x1x32x128xbf16>
    %37 = vector.shape_cast %36 : vector<1x1x32x128xbf16> to vector<32x128xbf16>
    %cst_14 = arith.constant dense<0.000000e+00> : vector<64x128xf32>
    %38 = tpu.matmul %35, %37, %cst_14 {dimension_numbers = #tpu.dot_dimension_numbers<[1], [0], [0], [1], [0, 0, 1, 1], [], []>} : vector<64x32xbf16>, vector<32x128xbf16>, vector<64x128xf32> -> vector<64x128xf32>
    %cst_15 = arith.constant dense<0.000000e+00> : vector<128xf32>
    %39 = vector.multi_reduction <add>, %38, %cst_15 [0] : vector<64x128xf32> to vector<128xf32>
    %40 = vector.shape_cast %39 : vector<128xf32> to vector<1x128xf32>
    %41 = arith.addf %29, %40 : vector<1x128xf32>
    %42 = arith.mulf %38, %38 : vector<64x128xf32>
    %cst_16 = arith.constant dense<0.000000e+00> : vector<128xf32>
    %43 = vector.multi_reduction <add>, %42, %cst_16 [0] : vector<64x128xf32> to vector<128xf32>
    %44 = vector.shape_cast %43 : vector<128xf32> to vector<1x128xf32>
    %45 = arith.addf %33, %44 : vector<1x128xf32>
    %46 = tpu.concatenate %9, %11, %15, %17 in 2 : vector<8x8x8xbf16>, vector<8x8x8xbf16>, vector<8x8x8xbf16>, vector<8x8x8xbf16> -> vector<8x8x32xbf16>
    %47 = vector.shape_cast %46 : vector<8x8x32xbf16> to vector<64x32xbf16>
    %c1_17 = arith.constant 1 : index
    %c0_18 = arith.constant 0 : index
    %c0_19 = arith.constant 0 : index
    %c0_20 = arith.constant 0 : index
    %48 = vector.load %arg3[%c1_17, %c0_18, %c0_19, %c0_20] : memref<2x2x32x128xbf16, #tpu.memory_space<vmem>>, vector<1x1x32x128xbf16>
    %49 = vector.shape_cast %48 : vector<1x1x32x128xbf16> to vector<32x128xbf16>
    %cst_21 = arith.constant dense<0.000000e+00> : vector<64x128xf32>
    %50 = tpu.matmul %47, %49, %cst_21 {dimension_numbers = #tpu.dot_dimension_numbers<[1], [0], [0], [1], [0, 0, 1, 1], [], []>} : vector<64x32xbf16>, vector<32x128xbf16>, vector<64x128xf32> -> vector<64x128xf32>
    %cst_22 = arith.constant dense<0.000000e+00> : vector<128xf32>
    %51 = vector.multi_reduction <add>, %50, %cst_22 [0] : vector<64x128xf32> to vector<128xf32>
    %52 = vector.shape_cast %51 : vector<128xf32> to vector<1x128xf32>
    %53 = arith.addf %41, %52 : vector<1x128xf32>
    %54 = arith.mulf %50, %50 : vector<64x128xf32>
    %cst_23 = arith.constant dense<0.000000e+00> : vector<128xf32>
    %55 = vector.multi_reduction <add>, %54, %cst_23 [0] : vector<64x128xf32> to vector<128xf32>
    %56 = vector.shape_cast %55 : vector<128xf32> to vector<1x128xf32>
    %57 = arith.addf %45, %56 : vector<1x128xf32>
    %58 = tpu.concatenate %11, %13, %17, %19 in 2 : vector<8x8x8xbf16>, vector<8x8x8xbf16>, vector<8x8x8xbf16>, vector<8x8x8xbf16> -> vector<8x8x32xbf16>
    %59 = vector.shape_cast %58 : vector<8x8x32xbf16> to vector<64x32xbf16>
    %c1_24 = arith.constant 1 : index
    %c1_25 = arith.constant 1 : index
    %c0_26 = arith.constant 0 : index
    %c0_27 = arith.constant 0 : index
    %60 = vector.load %arg3[%c1_24, %c1_25, %c0_26, %c0_27] : memref<2x2x32x128xbf16, #tpu.memory_space<vmem>>, vector<1x1x32x128xbf16>
    %61 = vector.shape_cast %60 : vector<1x1x32x128xbf16> to vector<32x128xbf16>
    %cst_28 = arith.constant dense<0.000000e+00> : vector<64x128xf32>
    %62 = tpu.matmul %59, %61, %cst_28 {dimension_numbers = #tpu.dot_dimension_numbers<[1], [0], [0], [1], [0, 0, 1, 1], [], []>} : vector<64x32xbf16>, vector<32x128xbf16>, vector<64x128xf32> -> vector<64x128xf32>
    %cst_29 = arith.constant dense<0.000000e+00> : vector<128xf32>
    %63 = vector.multi_reduction <add>, %62, %cst_29 [0] : vector<64x128xf32> to vector<128xf32>
    %64 = vector.shape_cast %63 : vector<128xf32> to vector<1x128xf32>
    %65 = arith.addf %53, %64 : vector<1x128xf32>
    %66 = arith.mulf %62, %62 : vector<64x128xf32>
    %cst_30 = arith.constant dense<0.000000e+00> : vector<128xf32>
    %67 = vector.multi_reduction <add>, %66, %cst_30 [0] : vector<64x128xf32> to vector<128xf32>
    %68 = vector.shape_cast %67 : vector<128xf32> to vector<1x128xf32>
    %69 = arith.addf %57, %68 : vector<1x128xf32>
    %cst_31 = arith.constant 3.906250e-03 : f32
    %70 = vector.broadcast %cst_31 : f32 to vector<1x128xf32>
    %71 = arith.mulf %65, %70 : vector<1x128xf32>
    %cst_32 = arith.constant 3.906250e-03 : f32
    %72 = vector.broadcast %cst_32 : f32 to vector<1x128xf32>
    %73 = arith.mulf %69, %72 : vector<1x128xf32>
    %74 = arith.mulf %71, %71 : vector<1x128xf32>
    %75 = arith.subf %73, %74 : vector<1x128xf32>
    %cst_33 = arith.constant 9.99999974E-6 : f32
    %76 = vector.broadcast %cst_33 : f32 to vector<1x128xf32>
    %77 = arith.addf %75, %76 : vector<1x128xf32>
    %78 = math.rsqrt %77 : vector<1x128xf32>
    %79 = vector.broadcast %71 : vector<1x128xf32> to vector<64x128xf32>
    %80 = arith.subf %26, %79 : vector<64x128xf32>
    %81 = vector.broadcast %78 : vector<1x128xf32> to vector<64x128xf32>
    %82 = arith.mulf %80, %81 : vector<64x128xf32>
    %cst_34 = arith.constant 0.000000e+00 : f32
    %83 = vector.broadcast %cst_34 : f32 to vector<64x128xf32>
    %84 = arith.maximumf %82, %83 : vector<64x128xf32>
    %85 = vector.shape_cast %84 : vector<64x128xf32> to vector<8x8x128xf32>
    %86 = vector.broadcast %71 : vector<1x128xf32> to vector<64x128xf32>
    %87 = arith.subf %38, %86 : vector<64x128xf32>
    %88 = vector.broadcast %78 : vector<1x128xf32> to vector<64x128xf32>
    %89 = arith.mulf %87, %88 : vector<64x128xf32>
    %cst_35 = arith.constant 0.000000e+00 : f32
    %90 = vector.broadcast %cst_35 : f32 to vector<64x128xf32>
    %91 = arith.maximumf %89, %90 : vector<64x128xf32>
    %92 = vector.shape_cast %91 : vector<64x128xf32> to vector<8x8x128xf32>
    %93 = vector.broadcast %71 : vector<1x128xf32> to vector<64x128xf32>
    %94 = arith.subf %50, %93 : vector<64x128xf32>
    %95 = vector.broadcast %78 : vector<1x128xf32> to vector<64x128xf32>
    %96 = arith.mulf %94, %95 : vector<64x128xf32>
    %cst_36 = arith.constant 0.000000e+00 : f32
    %97 = vector.broadcast %cst_36 : f32 to vector<64x128xf32>
    %98 = arith.maximumf %96, %97 : vector<64x128xf32>
    %99 = vector.shape_cast %98 : vector<64x128xf32> to vector<8x8x128xf32>
    %100 = vector.broadcast %71 : vector<1x128xf32> to vector<64x128xf32>
    %101 = arith.subf %62, %100 : vector<64x128xf32>
    %102 = vector.broadcast %78 : vector<1x128xf32> to vector<64x128xf32>
    %103 = arith.mulf %101, %102 : vector<64x128xf32>
    %cst_37 = arith.constant 0.000000e+00 : f32
    %104 = vector.broadcast %cst_37 : f32 to vector<64x128xf32>
    %105 = arith.maximumf %103, %104 : vector<64x128xf32>
    %106 = vector.shape_cast %105 : vector<64x128xf32> to vector<8x8x128xf32>
    %107 = tpu.concatenate %85, %92 in 2 : vector<8x8x128xf32>, vector<8x8x128xf32> -> vector<8x8x256xf32>
    %108 = vector.shape_cast %107 : vector<8x8x256xf32> to vector<8x16x128xf32>
    %109 = tpu.concatenate %99, %106 in 2 : vector<8x8x128xf32>, vector<8x8x128xf32> -> vector<8x8x256xf32>
    %110 = vector.shape_cast %109 : vector<8x8x256xf32> to vector<8x16x128xf32>
    %111 = tpu.concatenate %108, %110 in 1 : vector<8x16x128xf32>, vector<8x16x128xf32> -> vector<8x32x128xf32>
    %112 = vector.shape_cast %111 : vector<8x32x128xf32> to vector<16x16x128xf32>
    %113 = arith.truncf %112 : vector<16x16x128xf32> to vector<16x16x128xbf16>
    %c0_38 = arith.constant 0 : index
    %c0_39 = arith.constant 0 : index
    %c0_40 = arith.constant 0 : index
    %c0_41 = arith.constant 0 : index
    %114 = vector.load %arg4[%c0_38, %c0_39, %c0_40, %c0_41] : memref<1x16x16x128xbf16, #tpu.memory_space<vmem>>, vector<1x16x16x128xbf16>
    %115 = vector.shape_cast %114 : vector<1x16x16x128xbf16> to vector<16x16x128xbf16>
    %116 = vector.shape_cast %113 : vector<16x16x128xbf16> to vector<1x16x16x128xbf16>
    tpu.vector_store %arg4[%c0_38, %c0_39, %c0_40, %c0_41], %116 {strides = array<i32>} : memref<1x16x16x128xbf16, #tpu.memory_space<vmem>>, vector<1x16x16x128xbf16>,
    return
  }
  func.func @transform_0(%arg0: i32, %arg1: i32) -> (i32, i32, i32, i32) {
    %c0_i32 = arith.constant 0 : i32
    %c0_i32_0 = arith.constant 0 : i32
    %c0_i32_1 = arith.constant 0 : i32
    %c0_i32_2 = arith.constant 0 : i32
    return %arg0, %c0_i32, %c0_i32_0, %c0_i32_1 : i32, i32, i32, i32
  }
  func.func @transform_1(%arg0: i32, %arg1: i32) -> (i32, i32, i32, i32) {
    %c0_i32 = arith.constant 0 : i32
    %c0_i32_0 = arith.constant 0 : i32
    %c0_i32_1 = arith.constant 0 : i32
    %c0_i32_2 = arith.constant 0 : i32
    return %c0_i32, %c0_i32_0, %c0_i32_1, %arg1 : i32, i32, i32, i32
  }
  func.func @transform_2(%arg0: i32, %arg1: i32) -> (i32, i32, i32, i32) {
    %c0_i32 = arith.constant 0 : i32
    %c0_i32_0 = arith.constant 0 : i32
    %c0_i32_1 = arith.constant 0 : i32
    return %arg0, %c0_i32, %c0_i32_0, %arg1 : i32, i32, i32, i32
  }
}

</mosaic_0001>

<llo_original>
// kernel: unet_up_forward.1
$region0: #{unet_up_forward.1}
  #allocation0 [shape = 'u32[]', space=smem, size = 0x4, offset = 0x4, fixed_abs, tag = 'smem constant byte address 0x4 - core index']
  #allocation1 [shape = 'u32[144,128]{1,0:T(1,128)}', space=vmem, size = 0x12000, scoped, tag = 'internal scratch']
  %s0 = inlined_call_operand.vmem [shape: f32[2,10,10,8], index: 0, kind: input, shape index: {}]
  %s1 = inlined_call_operand.vmem [shape: bf16[2,2,32,128], index: 1, kind: input, shape index: {}]
  %s2 = inlined_call_operand.vmem [shape: bf16[2,16,16,128], index: 2, kind: output, shape index: {}]
  %s3 = sld [smem:[#allocation0]]
  $region41: #{unet_up_forward.1} parent=0
    _
  %s5 = ssub.s32 1, %s3
  %s6 = scalar_select 0, %s5, %s3
  loop: start=0, step=1, limit=4
  $region2: #{unet_up_forward.1} parent=0 // loop_pre_header
    _
  $region3: #{unet_up_forward.1} parent=0 // loop_header
    %s8 = sphi 0, %s12
    %p9 = scmp.ge.s32.totalorder %s8, 4
    %s15 = sphi 0, %s27
    %s16 = sphi 0, %s23
    %s17 = sphi 0, %s15
    %s18 = sphi 0, %s16
    %s19 = sphi 0, %s17
    %s20 = sphi 0, %s18
    %s30 = sphi 0, %s32
    %s33 = sphi 0, %s30
    %s34 = sphi 0, %s33
    %s50 = sphi 0, %s34
    %s56 = sphi 0, %s58
    %s59 = sphi 0, %s56
    %s60 = sphi 0, %s59
    %s76 = sphi 0, %s60
    %s84 = sphi 0, %s86
    %s87 = sphi 0, %s84
    %s88 = sphi 0, %s87
    %s104 = sphi 0, %s88
  $region4: #{unet_up_forward.1} parent=0 // loop_header_branch
    %11 = sbr.rel (%p9) target = $region8
  $region5: #{unet_up_forward.1} parent=0 // loop_body
    %s13 = ssub.s32 %s8, 1
    %s14 = ssub.s32 %s8, 2
    %s21 = sadd.s32 1, %s16
    %p22 = scmp.ge.s32.totalorder %s21, 1
    %s23 = scalar_select %p22, 0, %s21
    %s24 = sadd.s32 1, %s15
    %s25 = scalar_select %p22, %s24, %s15
    %p26 = scmp.ge.s32.totalorder %s25, 2
    %s27 = scalar_select %p26, 0, %s25
    %s28 = ssub.s32 %s15, %s27
    %p29 = scmp.eq.s32.totalorder %s28, 0
    %s31 = sadd.s32 %s30, 1
    %s32 = scalar_select %p29, %s30, %s31
    %p35 = pneg %p29
    %p36 = scmp.eq.s32.totalorder %s8, 1
    %p37 = por %p35, %p36
    %p38 = scmp.ne.s32.totalorder %s30, %s33
    %p39 = scmp.eq.s32.totalorder %s8, 0
    %p40 = por %p38, %p39
    %p41 = scmp.ne.s32.totalorder %s30, %s33
    %p42 = scmp.eq.s32.totalorder %s13, 1
    %p43 = por %p41, %p42
    %p44 = scmp.ne.s32.totalorder %s33, %s34
    %p45 = scmp.eq.s32.totalorder %s13, 0
    %p46 = por %p44, %p45
    %p47 = scmp.ne.s32.totalorder %s33, %s34
    %p48 = scmp.eq.s32.totalorder %s14, 1
    %p49 = por %p47, %p48
    %p51 = scmp.ne.s32.totalorder %s34, %s50
    %p52 = scmp.eq.s32.totalorder %s14, 0
    %p53 = por %p51, %p52
    %s54 = ssub.s32 %s16, %s23
    %p55 = scmp.eq.s32.totalorder %s54, 0
    %s57 = sadd.s32 %s56, 1
    %s58 = scalar_select %p55, %s56, %s57
    %p61 = pneg %p55
    %p62 = scmp.eq.s32.totalorder %s8, 1
    %p63 = por %p61, %p62
    %p64 = scmp.ne.s32.totalorder %s56, %s59
    %p65 = scmp.eq.s32.totalorder %s8, 0
    %p66 = por %p64, %p65
    %p67 = scmp.ne.s32.totalorder %s56, %s59
    %p68 = scmp.eq.s32.totalorder %s13, 1
    %p69 = por %p67, %p68
    %p70 = scmp.ne.s32.totalorder %s59, %s60
    %p71 = scmp.eq.s32.totalorder %s13, 0
    %p72 = por %p70, %p71
    %p73 = scmp.ne.s32.totalorder %s59, %s60
    %p74 = scmp.eq.s32.totalorder %s14, 1
    %p75 = por %p73, %p74
    %p77 = scmp.ne.s32.totalorder %s60, %s76
    %p78 = scmp.eq.s32.totalorder %s14, 0
    %p79 = por %p77, %p78
    %s80 = ssub.s32 %s15, %s27
    %s81 = ssub.s32 %s16, %s23
    %s82 = sor.u32 %s80, %s81
    %p83 = scmp.eq.s32.totalorder %s82, 0
    %s85 = sadd.s32 %s84, 1
    %s86 = scalar_select %p83, %s84, %s85
    %p89 = pneg %p83
    %p90 = scmp.eq.s32.totalorder %s8, 1
    %p91 = por %p89, %p90
    %p92 = scmp.ne.s32.totalorder %s84, %s87
    %p93 = scmp.eq.s32.totalorder %s8, 0
    %p94 = por %p92, %p93
    %p95 = scmp.ne.s32.totalorder %s84, %s87
    %p96 = scmp.eq.s32.totalorder %s13, 1
    %p97 = por %p95, %p96
    %p98 = scmp.ne.s32.totalorder %s87, %s88
    %p99 = scmp.eq.s32.totalorder %s13, 0
    %p100 = por %p98, %p99
    %p101 = scmp.ne.s32.totalorder %s87, %s88
    %p102 = scmp.eq.s32.totalorder %s14, 1
    %p103 = por %p101, %p102
    %p105 = scmp.ne.s32.totalorder %s88, %s104
    %p106 = scmp.eq.s32.totalorder %s14, 0
    %p107 = por %p105, %p106
    %p108 = scmp.le.s32.totalorder 1, %s8
    %p109 = scmp.lt.s32.totalorder %s8, 3
    %p110 = pnand %p108, %p109
    %p111 = pneg %p110
    // Predicated region
    $region9: #{unet_up_forward.1} parent=5 // pred_check
      _
    $region10: #{unet_up_forward.1} parent=5 // pred_check_branch
      %113 = sbr.rel (%p110) target = $region12
    $region11: #{unet_up_forward.1} parent=5 // pred_region
      %s114 = ssub.s32 %s8, 1
      // Predicated region
      $region13: #{unet_up_forward.1} parent=11 // pred_check
        %p115 = pneg %p72
      $region14: #{unet_up_forward.1} parent=11 // pred_check_branch
        %117 = sbr.rel (%p115) target = $region16
      $region15: #{unet_up_forward.1} parent=11 // pred_region
        %p118 = scmp.lt.s32.totalorder %s18, 0
        %s119 = scalar_select %p118, %s18, 0
        %s120 = smul.addr %s119, 4
        %s121 = scalar_lea.vmem %s1, %s120
      $region16: #{unet_up_forward.1} parent=11 // pred_fallthru
        _
    $region12: #{unet_up_forward.1} parent=5 // pred_fallthru
      _
    %p122 = scmp.lt.s32.totalorder %s8, 2
    // Predicated region
    $region17: #{unet_up_forward.1} parent=5 // pred_check
      %p123 = pneg %p122
    $region18: #{unet_up_forward.1} parent=5 // pred_check_branch
      %125 = sbr.rel (%p123) target = $region20
    $region19: #{unet_up_forward.1} parent=5 // pred_region
      // Predicated region
      $region21: #{unet_up_forward.1} parent=19 // pred_check
        %p126 = pneg %p40
      $region22: #{unet_up_forward.1} parent=19 // pred_check_branch
        %128 = sbr.rel (%p126) target = $region24
      $region23: #{unet_up_forward.1} parent=19 // pred_region
        %p129 = scmp.lt.s32.totalorder %s15, 1
        %s130 = scalar_select %p129, %s15, 1
        %s131 = smul.addr %s130, 20
        %s132 = smul.addr %s131, 8
        %s133 = scalar_lea.vmem %s0, %s132
      $region24: #{unet_up_forward.1} parent=19 // pred_fallthru
        _
    $region20: #{unet_up_forward.1} parent=5 // pred_fallthru
      _
    %p134 = scmp.le.s32.totalorder 1, %s8
    %p135 = scmp.lt.s32.totalorder %s8, 3
    %p136 = pnand %p134, %p135
    %p137 = pneg %p136
    // Predicated region
    $region25: #{unet_up_forward.1} parent=5 // pred_check
      _
    $region26: #{unet_up_forward.1} parent=5 // pred_check_branch
      %139 = sbr.rel (%p136) target = $region28
    $region27: #{unet_up_forward.1} parent=5 // pred_region
      %s140 = ssub.s32 %s8, 1
      %p141 = scmp.lt.s32.totalorder %s17, 1
      %s142 = scalar_select %p141, %s17, 1
      %s143 = smul.addr %s142, 20
      %s144 = smul.addr %s143, 8
      %s145 = scalar_lea.vmem %s0, %s144
      %p146 = pneg %p46
      %p147 = pneg %p43
      %p148 = scmp.lt.s32.totalorder %s18, 0
      %s149 = scalar_select %p148, %s18, 0
      %s150 = smul.addr %s149, 4
      %s151 = scalar_lea.vmem %s1, %s150
      %p152 = pneg %p72
      %p153 = pneg %p69
      %p154 = pneg %p100
      %p155 = pneg %p97
      %p156 = scmp.lt.s32.totalorder %s17, 1
      %s157 = scalar_select %p156, %s17, 1
      %p158 = scmp.lt.s32.totalorder %s18, 0
      %s159 = scalar_select %p158, %s18, 0
      %s160 = smul.addr %s157, 32
      %s161 = sadd.s32 %s159, %s160
      %s162 = smul.addr %s161, 4
      %s163 = scalar_lea.vmem %s2, %s162
      %p164 = scmp.lt.s32.totalorder %s17, 1
      %s165 = scalar_select %p164, %s17, 1
      %s166 = smul.addr %s165, 20
      %s167 = smul.addr %s166, 8
      %s168 = scalar_lea.vmem %s0, %s167
      %p169 = scmp.lt.s32.totalorder %s18, 0
      %s170 = scalar_select %p169, %s18, 0
      %s171 = smul.addr %s170, 4
      %s172 = scalar_lea.vmem %s1, %s171
      %p173 = scmp.lt.s32.totalorder %s17, 1
      %s174 = scalar_select %p173, %s17, 1
      %p175 = scmp.lt.s32.totalorder %s18, 0
      %s176 = scalar_select %p175, %s18, 0
      %s177 = smul.addr %s174, 32
      %s178 = sadd.s32 %s176, %s177
      %s179 = smul.addr %s178, 4
      %s180 = scalar_lea.vmem %s2, %s179
      %v182 = vld [vmem:[%s168] sm:$0xff]
      %v183 = vld [vmem:[%s168 + $0x8] sm:$0x3]
      %v184 = vld [vmem:[%s168 + $0x10] sm:$0xff]
      %v185 = vld [vmem:[%s168 + $0x18] sm:$0x3]
      %v186 = vld [vmem:[%s168 + $0x20] sm:$0xff]
      %v187 = vld [vmem:[%s168 + $0x28] sm:$0x3]
      %v188 = vld [vmem:[%s168 + $0x30] sm:$0xff]
      %v189 = vld [vmem:[%s168 + $0x38] sm:$0x3]
      %v190 = vld [vmem:[%s168 + $0x40] sm:$0xff]
      %v191 = vld [vmem:[%s168 + $0x48] sm:$0x3]
      %v192 = vld [vmem:[%s168 + $0x50] sm:$0xff]
      %v193 = vld [vmem:[%s168 + $0x58] sm:$0x3]
      %v194 = vld [vmem:[%s168 + $0x60] sm:$0xff]
      %v195 = vld [vmem:[%s168 + $0x68] sm:$0x3]
      %v196 = vld [vmem:[%s168 + $0x70] sm:$0xff]
      %v197 = vld [vmem:[%s168 + $0x78] sm:$0x3]
      %v198 = vld [vmem:[%s168 + $0x80] sm:$0xff]
      %v199 = vld [vmem:[%s168 + $0x88] sm:$0x3]
      %v200 = vld [vmem:[%s168 + $0x90] sm:$0xff]
      %v201 = vld [vmem:[%s168 + $0x98] sm:$0x3]
      %v202 = vpack.c.bf16 %v182, %v182
      %v203 = vpack.c.bf16 %v184, %v184
      %v204 = vpack.c.bf16 %v186, %v186
      %v205 = vpack.c.bf16 %v188, %v188
      %v206 = vpack.c.bf16 %v190, %v190
      %v207 = vpack.c.bf16 %v192, %v192
      %v208 = vpack.c.bf16 %v194, %v194
      %v209 = vpack.c.bf16 %v196, %v196
      %v210 = vpack.c.bf16 %v183, %v182
      %v211 = vpack.c.bf16 %v185, %v184
      %v212 = vpack.c.bf16 %v187, %v186
      %v213 = vpack.c.bf16 %v189, %v188
      %v214 = vpack.c.bf16 %v191, %v190
      %v215 = vpack.c.bf16 %v193, %v192
      %v216 = vpack.c.bf16 %v195, %v194
      %v217 = vpack.c.bf16 %v197, %v196
      %v218 = vpack.c.bf16 %v198, %v198
      %v219 = vpack.c.bf16 %v199, %v198
      %v220 = vpack.c.bf16 %v200, %v200
      %v221 = vpack.c.bf16 %v201, %v200
      %v223 = vshrl.u32 %v210, 16
      %v225 = vshll.u32 %v210, 16
      %v227 = vrot.slane %v225, 1
      %v228 = vor.u32 %v223, %v227
      %v230 = vshrl.u32 %v211, 16
      %v232 = vshll.u32 %v211, 16
      %v234 = vrot.slane %v232, 1
      %v235 = vor.u32 %v230, %v234
      %v237 = vshrl.u32 %v212, 16
      %v239 = vshll.u32 %v212, 16
      %v241 = vrot.slane %v239, 1
      %v242 = vor.u32 %v237, %v241
      %v244 = vshrl.u32 %v213, 16
      %v246 = vshll.u32 %v213, 16
      %v248 = vrot.slane %v246, 1
      %v249 = vor.u32 %v244, %v248
      %v251 = vshrl.u32 %v214, 16
      %v253 = vshll.u32 %v214, 16
      %v255 = vrot.slane %v253, 1
      %v256 = vor.u32 %v251, %v255
      %v258 = vshrl.u32 %v215, 16
      %v260 = vshll.u32 %v215, 16
      %v262 = vrot.slane %v260, 1
      %v263 = vor.u32 %v258, %v262
      %v265 = vshrl.u32 %v216, 16
      %v267 = vshll.u32 %v216, 16
      %v269 = vrot.slane %v267, 1
      %v270 = vor.u32 %v265, %v269
      %v272 = vshrl.u32 %v217, 16
      %v274 = vshll.u32 %v217, 16
      %v276 = vrot.slane %v274, 1
      %v277 = vor.u32 %v272, %v276
      %278 = vrot.lane.b32.xlu0 %v228, 8
      %v279 = vpop.permute.xlu0 %278
      %280 = vrot.lane.b32.xlu0 %v235, 8
      %v281 = vpop.permute.xlu0 %280
      %282 = vrot.lane.b32.xlu0 %v242, 8
      %v283 = vpop.permute.xlu0 %282
      %284 = vrot.lane.b32.xlu0 %v249, 8
      %v285 = vpop.permute.xlu0 %284
      %286 = vrot.lane.b32.xlu0 %v256, 8
      %v287 = vpop.permute.xlu0 %286
      %288 = vrot.lane.b32.xlu0 %v263, 8
      %v289 = vpop.permute.xlu0 %288
      %290 = vrot.lane.b32.xlu0 %v270, 8
      %v291 = vpop.permute.xlu0 %290
      %292 = vrot.lane.b32.xlu0 %v277, 8
      %v293 = vpop.permute.xlu0 %292
      %302 = vrot.lane.b32.xlu0 %v203, 16
      %v303 = vpop.permute.xlu0 %302
      %304 = vrot.lane.b32.xlu0 %v204, 16
      %v305 = vpop.permute.xlu0 %304
      %306 = vrot.lane.b32.xlu0 %v205, 16
      %v307 = vpop.permute.xlu0 %306
      %308 = vrot.lane.b32.xlu0 %v206, 16
      %v309 = vpop.permute.xlu0 %308
      %310 = vrot.lane.b32.xlu0 %v207, 16
      %v311 = vpop.permute.xlu0 %310
      %312 = vrot.lane.b32.xlu0 %v208, 16
      %v313 = vpop.permute.xlu0 %312
      %314 = vrot.lane.b32.xlu0 %v209, 16
      %v315 = vpop.permute.xlu0 %314
      %316 = vrot.lane.b32.xlu0 %v218, 16
      %v317 = vpop.permute.xlu0 %316
      %v319 = vshrl.u32 %v219, 16
      %v321 = vshll.u32 %v219, 16
      %v323 = vrot.slane %v321, 1
      %v324 = vor.u32 %v319, %v323
      %325 = vrot.lane.b32.xlu0 %v235, 24
      %v326 = vpop.permute.xlu0 %325
      %327 = vrot.lane.b32.xlu0 %v242, 24
      %v328 = vpop.permute.xlu0 %327
      %329 = vrot.lane.b32.xlu0 %v249, 24
      %v330 = vpop.permute.xlu0 %329
      %331 = vrot.lane.b32.xlu0 %v256, 24
      %v332 = vpop.permute.xlu0 %331
      %333 = vrot.lane.b32.xlu0 %v263, 24
      %v334 = vpop.permute.xlu0 %333
      %335 = vrot.lane.b32.xlu0 %v270, 24
      %v336 = vpop.permute.xlu0 %335
      %337 = vrot.lane.b32.xlu0 %v277, 24
      %v338 = vpop.permute.xlu0 %337
      %339 = vrot.lane.b32.xlu0 %v324, 24
      %v340 = vpop.permute.xlu0 %339
      %vm341 = vcmask 64512
      %v344 = vsel %vm341, %v202, %v279
      %v347 = vsel %vm341, %v203, %v281
      %v350 = vsel %vm341, %v204, %v283
      %v353 = vsel %vm341, %v205, %v285
      %v356 = vsel %vm341, %v206, %v287
      %v359 = vsel %vm341, %v207, %v289
      %v362 = vsel %vm341, %v208, %v291
      %v365 = vsel %vm341, %v209, %v293
      %vm366 = vcmask 130048
      %v368 = vsel %vm366, %v344, %v303
      %v370 = vsel %vm366, %v347, %v305
      %v372 = vsel %vm366, %v350, %v307
      %v374 = vsel %vm366, %v353, %v309
      %v376 = vsel %vm366, %v356, %v311
      %v378 = vsel %vm366, %v359, %v313
      %v380 = vsel %vm366, %v362, %v315
      %v382 = vsel %vm366, %v365, %v317
      %vm383 = vcmask 195584
      %v385 = vsel %vm383, %v368, %v326
      %v387 = vsel %vm383, %v370, %v328
      %v389 = vsel %vm383, %v372, %v330
      %v391 = vsel %vm383, %v374, %v332
      %v393 = vsel %vm383, %v376, %v334
      %v395 = vsel %vm383, %v378, %v336
      %v397 = vsel %vm383, %v380, %v338
      %v399 = vsel %vm383, %v382, %v340
      %v400 = vld [vmem:[%s172] sm:$0xf]
      %v401 = vld [vmem:[%s172 + $0x4] sm:$0xf]
      %v402 = vld [vmem:[%s172 + $0x8] sm:$0xf]
      %v403 = vld [vmem:[%s172 + $0xc] sm:$0xf]
      %v412 = vunpack.c.l.b16 %v385
      %v413 = vunpack.c.l.b16 %v387
      %v414 = vunpack.c.l.b16 %v389
      %v415 = vunpack.c.l.b16 %v391
      %v416 = vunpack.c.l.b16 %v393
      %v417 = vunpack.c.l.b16 %v395
      %v418 = vunpack.c.l.b16 %v397
      %v419 = vunpack.c.l.b16 %v399
      %v420 = vpack.c.b16 %v413, %v412
      %v421 = vpack.c.b16 %v415, %v414
      %v422 = vpack.c.b16 %v417, %v416
      %v423 = vpack.c.b16 %v419, %v418
      %v428 = vunpack.c.l.b16 %v400
      %v429 = vunpack.c.l.b16 %v401
      %v430 = vunpack.c.l.b16 %v402
      %v431 = vunpack.c.l.b16 %v403
      %v432 = vpack.c.b16 %v429, %v428
      %v433 = vpack.c.b16 %v431, %v430
      %vm436 = vcmask 261120
      %v438 = vsel %vm436, %v420, 0
      %v441 = vsel %vm436, %v421, 0
      %v444 = vsel %vm436, %v422, 0
      %v447 = vsel %vm436, %v423, 0
      %449 = vmatprep.subr.bf16.mxu0 0
      %450 = vmatpush1.bf16.msra.mxu0 0
      %451 = vmatprep.subr.bf16.mxu0 0
      %452 = vmatpush1.bf16.msra.mxu0 0
      %453 = vmatprep.subr.bf16.mxu0 0
      %454 = vmatpush1.bf16.msra.mxu0 0
      %455 = vmatprep.subr.bf16.mxu0 0
      %456 = vmatpush1.bf16.msra.mxu0 0
      %457 = vmatprep.subr.bf16.mxu0 0
      %458 = vmatpush1.bf16.msra.mxu0 0
      %459 = vmatprep.subr.bf16.mxu0 0
      %460 = vmatpush1.bf16.msra.mxu0 0
      %461 = vmatprep.subr.bf16.mxu0 0
      %462 = vmatpush1.bf16.msra.mxu0 %v433
      %463 = vmatprep.subr.bf16.mxu0 0
      %464 = vmatpush1.bf16.msra.mxu0 %v432
      %465 = vmatprep.subr.bf16.mxu0 0
      %466 = vmatpush2.bf16.msra.mxu0 0
      %467 = vmatprep.subr.bf16.mxu0 0
      %468 = vmatpush2.bf16.msra.mxu0 0
      %469 = vmatprep.subr.bf16.mxu0 0
      %470 = vmatpush2.bf16.msra.mxu0 0
      %471 = vmatprep.subr.bf16.mxu0 0
      %472 = vmatpush2.bf16.msra.mxu0 0
      %473 = vmatprep.subr.bf16.mxu0 0
      %474 = vmatpush2.bf16.msra.mxu0 0
      %475 = vmatprep.subr.bf16.mxu0 0
      %476 = vmatpush2.bf16.msra.mxu0 0
      %477 = vmatprep.subr.bf16.mxu0 0
      %478 = vmatpush2.bf16.msra.mxu0 0
      %479 = vmatprep.subr.bf16.mxu0 0
      %480 = vmatpush2.bf16.msra.mxu0 0
      %481 = vmatprep.mubr.bf16.mxu0 0
      %482 = vmatmul.mubr.bf16.gmra.mxu0 %v438
      %v483 = vpop.f32.mrf.mxu0
      %v484 = vadd.f32 0.0, %v483
      %v485 = vpop.f32.mrf.mxu0
      %v486 = vpop.f32.mrf.mxu0
      %v487 = vadd.f32 0.0, %v486
      %v488 = vpop.f32.mrf.mxu0
      %489 = vmatprep.mubr.bf16.mxu0 0
      %490 = vmatmul.mubr.bf16.gmra.mxu0 %v441
      %v491 = vpop.f32.mrf.mxu0
      %v492 = vadd.f32 0.0, %v491
      %v493 = vpop.f32.mrf.mxu0
      %v494 = vpop.f32.mrf.mxu0
      %v495 = vadd.f32 0.0, %v494
      %v496 = vpop.f32.mrf.mxu0
      %497 = vmatprep.mubr.bf16.mxu0 0
      %498 = vmatmul.mubr.bf16.gmra.mxu0 %v444
      %v499 = vpop.f32.mrf.mxu0
      %v500 = vadd.f32 0.0, %v499
      %v501 = vpop.f32.mrf.mxu0
      %v502 = vpop.f32.mrf.mxu0
      %v503 = vadd.f32 0.0, %v502
      %v504 = vpop.f32.mrf.mxu0
      %505 = vmatprep.mubr.bf16.mxu0 0
      %506 = vmatmul.mubr.bf16.gmra.mxu0 %v447
      %v507 = vpop.f32.mrf.mxu0
      %v508 = vadd.f32 0.0, %v507
      %v509 = vpop.f32.mrf.mxu0
      %v510 = vpop.f32.mrf.mxu0
      %v511 = vadd.f32 0.0, %v510
      %v512 = vpop.f32.mrf.mxu0
      %513 = vdwg.mxu0
      %v514 = vadd.f32 %v484, %v487
      %v515 = vadd.f32 %v514, %v492
      %v516 = vadd.f32 %v515, %v495
      %v517 = vadd.f32 %v516, %v500
      %v518 = vadd.f32 %v517, %v503
      %v519 = vadd.f32 %v518, %v508
      %v520 = vadd.f32 %v519, %v511
      %v521 = vrot.slane %v520, 4
      %v522 = vadd.f32 %v520, %v521
      %v523 = vrot.slane %v522, 2
      %v524 = vadd.f32 %v522, %v523
      %v525 = vrot.slane %v524, 1
      %v526 = vadd.f32 %v524, %v525
      %v527 = vadd.f32 %v526, 0.0
      %v528 = vmul.f32 %v484, %v484
      %v529 = vmul.f32 %v487, %v487
      %v530 = vmul.f32 %v492, %v492
      %v531 = vmul.f32 %v495, %v495
      %v532 = vmul.f32 %v500, %v500
      %v533 = vmul.f32 %v503, %v503
      %v534 = vmul.f32 %v508, %v508
      %v535 = vmul.f32 %v511, %v511
      %v536 = vadd.f32 %v528, %v529
      %v537 = vadd.f32 %v536, %v530
      %v538 = vadd.f32 %v537, %v531
      %v539 = vadd.f32 %v538, %v532
      %v540 = vadd.f32 %v539, %v533
      %v541 = vadd.f32 %v540, %v534
      %v542 = vadd.f32 %v541, %v535
      %v543 = vrot.slane %v542, 4
      %v544 = vadd.f32 %v542, %v543
      %v545 = vrot.slane %v544, 2
      %v546 = vadd.f32 %v544, %v545
      %v547 = vrot.slane %v546, 1
      %v548 = vadd.f32 %v546, %v547
      %v549 = vadd.f32 %v548, 0.0
      %558 = vrot.lane.b32.xlu0 %v211, 16
      %v559 = vpop.permute.xlu0 %558
      %560 = vrot.lane.b32.xlu0 %v212, 16
      %v561 = vpop.permute.xlu0 %560
      %562 = vrot.lane.b32.xlu0 %v213, 16
      %v563 = vpop.permute.xlu0 %562
      %564 = vrot.lane.b32.xlu0 %v214, 16
      %v565 = vpop.permute.xlu0 %564
      %566 = vrot.lane.b32.xlu0 %v215, 16
      %v567 = vpop.permute.xlu0 %566
      %568 = vrot.lane.b32.xlu0 %v216, 16
      %v569 = vpop.permute.xlu0 %568
      %570 = vrot.lane.b32.xlu0 %v217, 16
      %v571 = vpop.permute.xlu0 %570
      %572 = vrot.lane.b32.xlu0 %v219, 16
      %v573 = vpop.permute.xlu0 %572
      %v574 = vsel %vm341, %v210, %v279
      %v575 = vsel %vm341, %v211, %v281
      %v576 = vsel %vm341, %v212, %v283
      %v577 = vsel %vm341, %v213, %v285
      %v578 = vsel %vm341, %v214, %v287
      %v579 = vsel %vm341, %v215, %v289
      %v580 = vsel %vm341, %v216, %v291
      %v581 = vsel %vm341, %v217, %v293
      %v583 = vsel %vm366, %v574, %v559
      %v585 = vsel %vm366, %v575, %v561
      %v587 = vsel %vm366, %v576, %v563
      %v589 = vsel %vm366, %v577, %v565
      %v591 = vsel %vm366, %v578, %v567
      %v593 = vsel %vm366, %v579, %v569
      %v595 = vsel %vm366, %v580, %v571
      %v597 = vsel %vm366, %v581, %v573
      %v598 = vsel %vm383, %v583, %v326
      %v599 = vsel %vm383, %v585, %v328
      %v600 = vsel %vm383, %v587, %v330
      %v601 = vsel %vm383, %v589, %v332
      %v602 = vsel %vm383, %v591, %v334
      %v603 = vsel %vm383, %v593, %v336
      %v604 = vsel %vm383, %v595, %v338
      %v605 = vsel %vm383, %v597, %v340
      %v614 = vunpack.c.l.b16 %v598
      %v615 = vunpack.c.h.b16 %v598
      %v616 = vunpack.c.l.b16 %v599
      %v617 = vunpack.c.h.b16 %v599
      %v618 = vunpack.c.l.b16 %v600
      %v619 = vunpack.c.h.b16 %v600
      %v620 = vunpack.c.l.b16 %v601
      %v621 = vunpack.c.h.b16 %v601
      %v622 = vunpack.c.l.b16 %v602
      %v623 = vunpack.c.h.b16 %v602
      %v624 = vunpack.c.l.b16 %v603
      %v625 = vunpack.c.h.b16 %v603
      %v626 = vunpack.c.l.b16 %v604
      %v627 = vunpack.c.h.b16 %v604
      %v628 = vunpack.c.l.b16 %v605
      %v629 = vunpack.c.h.b16 %v605
      %v630 = vpack.c.b16 %v614, %v614
      %v631 = vpack.c.b16 %v615, %v615
      %v632 = vpack.c.b16 %v616, %v616
      %v633 = vpack.c.b16 %v617, %v617
      %v634 = vpack.c.b16 %v618, %v618
      %v635 = vpack.c.b16 %v619, %v619
      %v636 = vpack.c.b16 %v620, %v620
      %v637 = vpack.c.b16 %v621, %v621
      %v638 = vpack.c.b16 %v622, %v622
      %v639 = vpack.c.b16 %v623, %v623
      %v640 = vpack.c.b16 %v624, %v624
      %v641 = vpack.c.b16 %v625, %v625
      %v642 = vpack.c.b16 %v626, %v626
      %v643 = vpack.c.b16 %v627, %v627
      %v644 = vpack.c.b16 %v628, %v628
      %v645 = vpack.c.b16 %v629, %v629
      %vm646 = vsmask.f32 3328
      %vm647 = vsmask.f32 7440
      %vm648 = vmor %vm646, %vm647
      %v650 = vshrl.u32 %v630, 16
      %v652 = vrot.slane %v650, 4
      %v653 = vshll.u32 %v630, 16
      %v655 = vrot.slane %v653, 5
      %v656 = vor.u32 %v652, %v655
      %v657 = vrot.slane %v656, 4
      %v659 = vshll.u32 %v631, 16
      %v661 = vrot.slane %v659, 5
      %v662 = vsel %vm648, %v657, %v661
      %v664 = vshrl.u32 %v632, 16
      %v666 = vrot.slane %v664, 4
      %v667 = vshll.u32 %v632, 16
      %v669 = vrot.slane %v667, 5
      %v670 = vor.u32 %v666, %v669
      %v671 = vrot.slane %v670, 4
      %v673 = vshll.u32 %v633, 16
      %v675 = vrot.slane %v673, 5
      %v676 = vsel %vm648, %v671, %v675
      %v678 = vshrl.u32 %v634, 16
      %v680 = vrot.slane %v678, 4
      %v681 = vshll.u32 %v634, 16
      %v683 = vrot.slane %v681, 5
      %v684 = vor.u32 %v680, %v683
      %v685 = vrot.slane %v684, 4
      %v687 = vshll.u32 %v635, 16
      %v689 = vrot.slane %v687, 5
      %v690 = vsel %vm648, %v685, %v689
      %v692 = vshrl.u32 %v636, 16
      %v694 = vrot.slane %v692, 4
      %v695 = vshll.u32 %v636, 16
      %v697 = vrot.slane %v695, 5
      %v698 = vor.u32 %v694, %v697
      %v699 = vrot.slane %v698, 4
      %v701 = vshll.u32 %v637, 16
      %v703 = vrot.slane %v701, 5
      %v704 = vsel %vm648, %v699, %v703
      %v706 = vshrl.u32 %v638, 16
      %v708 = vrot.slane %v706, 4
      %v709 = vshll.u32 %v638, 16
      %v711 = vrot.slane %v709, 5
      %v712 = vor.u32 %v708, %v711
      %v713 = vrot.slane %v712, 4
      %v715 = vshll.u32 %v639, 16
      %v717 = vrot.slane %v715, 5
      %v718 = vsel %vm648, %v713, %v717
      %v720 = vshrl.u32 %v640, 16
      %v722 = vrot.slane %v720, 4
      %v723 = vshll.u32 %v640, 16
      %v725 = vrot.slane %v723, 5
      %v726 = vor.u32 %v722, %v725
      %v727 = vrot.slane %v726, 4
      %v729 = vshll.u32 %v641, 16
      %v731 = vrot.slane %v729, 5
      %v732 = vsel %vm648, %v727, %v731
      %v734 = vshrl.u32 %v642, 16
      %v736 = vrot.slane %v734, 4
      %v737 = vshll.u32 %v642, 16
      %v739 = vrot.slane %v737, 5
      %v740 = vor.u32 %v736, %v739
      %v741 = vrot.slane %v740, 4
      %v743 = vshll.u32 %v643, 16
      %v745 = vrot.slane %v743, 5
      %v746 = vsel %vm648, %v741, %v745
      %v748 = vshrl.u32 %v644, 16
      %v750 = vrot.slane %v748, 4
      %v751 = vshll.u32 %v644, 16
      %v753 = vrot.slane %v751, 5
      %v754 = vor.u32 %v750, %v753
      %v755 = vrot.slane %v754, 4
      %v757 = vshll.u32 %v645, 16
      %v759 = vrot.slane %v757, 5
      %v760 = vsel %vm648, %v755, %v759
      %s761 = scalar_lea.vmem %s172, 16
      %v762 = vld [vmem:[%s761] sm:$0xf]
      %v763 = vld [vmem:[%s761 + $0x4] sm:$0xf]
      %v764 = vld [vmem:[%s761 + $0x8] sm:$0xf]
      %v765 = vld [vmem:[%s761 + $0xc] sm:$0xf]
      %v766 = vunpack.c.l.b16 %v662
      %v767 = vunpack.c.l.b16 %v676
      %v768 = vunpack.c.l.b16 %v690
      %v769 = vunpack.c.l.b16 %v704
      %v770 = vunpack.c.l.b16 %v718
      %v771 = vunpack.c.l.b16 %v732
      %v772 = vunpack.c.l.b16 %v746
      %v773 = vunpack.c.l.b16 %v760
      %v774 = vpack.c.b16 %v767, %v766
      %v775 = vpack.c.b16 %v769, %v768
      %v776 = vpack.c.b16 %v771, %v770
      %v777 = vpack.c.b16 %v773, %v772
      %v782 = vunpack.c.l.b16 %v762
      %v783 = vunpack.c.l.b16 %v763
      %v784 = vunpack.c.l.b16 %v764
      %v785 = vunpack.c.l.b16 %v765
      %v786 = vpack.c.b16 %v783, %v782
      %v787 = vpack.c.b16 %v785, %v784
      %v791 = vsel %vm436, %v774, 0
      %v794 = vsel %vm436, %v775, 0
      %v797 = vsel %vm436, %v776, 0
      %v800 = vsel %vm436, %v777, 0
      %802 = vmatprep.subr.bf16.mxu0 0
      %803 = vmatpush1.bf16.msra.mxu0 0
      %804 = vmatprep.subr.bf16.mxu0 0
      %805 = vmatpush1.bf16.msra.mxu0 0
      %806 = vmatprep.subr.bf16.mxu0 0
      %807 = vmatpush1.bf16.msra.mxu0 0
      %808 = vmatprep.subr.bf16.mxu0 0
      %809 = vmatpush1.bf16.msra.mxu0 0
      %810 = vmatprep.subr.bf16.mxu0 0
      %811 = vmatpush1.bf16.msra.mxu0 0
      %812 = vmatprep.subr.bf16.mxu0 0
      %813 = vmatpush1.bf16.msra.mxu0 0
      %814 = vmatprep.subr.bf16.mxu0 0
      %815 = vmatpush1.bf16.msra.mxu0 %v787
      %816 = vmatprep.subr.bf16.mxu0 0
      %817 = vmatpush1.bf16.msra.mxu0 %v786
      %818 = vmatprep.subr.bf16.mxu0 0
      %819 = vmatpush2.bf16.msra.mxu0 0
      %820 = vmatprep.subr.bf16.mxu0 0
      %821 = vmatpush2.bf16.msra.mxu0 0
      %822 = vmatprep.subr.bf16.mxu0 0
      %823 = vmatpush2.bf16.msra.mxu0 0
      %824 = vmatprep.subr.bf16.mxu0 0
      %825 = vmatpush2.bf16.msra.mxu0 0
      %826 = vmatprep.subr.bf16.mxu0 0
      %827 = vmatpush2.bf16.msra.mxu0 0
      %828 = vmatprep.subr.bf16.mxu0 0
      %829 = vmatpush2.bf16.msra.mxu0 0
      %830 = vmatprep.subr.bf16.mxu0 0
      %831 = vmatpush2.bf16.msra.mxu0 0
      %832 = vmatprep.subr.bf16.mxu0 0
      %833 = vmatpush2.bf16.msra.mxu0 0
      %834 = vmatprep.mubr.bf16.mxu0 0
      %835 = vmatmul.mubr.bf16.gmra.mxu0 %v791
      %v836 = vpop.f32.mrf.mxu0
      %v837 = vadd.f32 0.0, %v836
      %v838 = vpop.f32.mrf.mxu0
      %v839 = vpop.f32.mrf.mxu0
      %v840 = vadd.f32 0.0, %v839
      %v841 = vpop.f32.mrf.mxu0
      %842 = vmatprep.mubr.bf16.mxu0 0
      %843 = vmatmul.mubr.bf16.gmra.mxu0 %v794
      %v844 = vpop.f32.mrf.mxu0
      %v845 = vadd.f32 0.0, %v844
      %v846 = vpop.f32.mrf.mxu0
      %v847 = vpop.f32.mrf.mxu0
      %v848 = vadd.f32 0.0, %v847
      %v849 = vpop.f32.mrf.mxu0
      %850 = vmatprep.mubr.bf16.mxu0 0
      %851 = vmatmul.mubr.bf16.gmra.mxu0 %v797
      %v852 = vpop.f32.mrf.mxu0
      %v853 = vadd.f32 0.0, %v852
      %v854 = vpop.f32.mrf.mxu0
      %v855 = vpop.f32.mrf.mxu0
      %v856 = vadd.f32 0.0, %v855
      %v857 = vpop.f32.mrf.mxu0
      %858 = vmatprep.mubr.bf16.mxu0 0
      %859 = vmatmul.mubr.bf16.gmra.mxu0 %v800
      %v860 = vpop.f32.mrf.mxu0
      %v861 = vadd.f32 0.0, %v860
      %v862 = vpop.f32.mrf.mxu0
      %v863 = vpop.f32.mrf.mxu0
      %v864 = vadd.f32 0.0, %v863
      %v865 = vpop.f32.mrf.mxu0
      %866 = vdwg.mxu0
      %v867 = vadd.f32 %v837, %v840
      %v868 = vadd.f32 %v867, %v845
      %v869 = vadd.f32 %v868, %v848
      %v870 = vadd.f32 %v869, %v853
      %v871 = vadd.f32 %v870, %v856
      %v872 = vadd.f32 %v871, %v861
      %v873 = vadd.f32 %v872, %v864
      %v874 = vrot.slane %v873, 4
      %v875 = vadd.f32 %v873, %v874
      %v876 = vrot.slane %v875, 2
      %v877 = vadd.f32 %v875, %v876
      %v878 = vrot.slane %v877, 1
      %v879 = vadd.f32 %v877, %v878
      %v880 = vadd.f32 %v527, %v879
      %v881 = vmul.f32 %v837, %v837
      %v882 = vmul.f32 %v840, %v840
      %v883 = vmul.f32 %v845, %v845
      %v884 = vmul.f32 %v848, %v848
      %v885 = vmul.f32 %v853, %v853
      %v886 = vmul.f32 %v856, %v856
      %v887 = vmul.f32 %v861, %v861
      %v888 = vmul.f32 %v864, %v864
      %v889 = vadd.f32 %v881, %v882
      %v890 = vadd.f32 %v889, %v883
      %v891 = vadd.f32 %v890, %v884
      %v892 = vadd.f32 %v891, %v885
      %v893 = vadd.f32 %v892, %v886
      %v894 = vadd.f32 %v893, %v887
      %v895 = vadd.f32 %v894, %v888
      %v896 = vrot.slane %v895, 4
      %v897 = vadd.f32 %v895, %v896
      %v898 = vrot.slane %v897, 2
      %v899 = vadd.f32 %v897, %v898
      %v900 = vrot.slane %v899, 1
      %v901 = vadd.f32 %v899, %v900
      %v902 = vadd.f32 %v549, %v901
      %903 = vrot.lane.b32.xlu0 %v324, 8
      %v904 = vpop.permute.xlu0 %903
      %906 = vrot.lane.b32.xlu0 %v220, 16
      %v907 = vpop.permute.xlu0 %906
      %v909 = vshrl.u32 %v221, 16
      %v911 = vshll.u32 %v221, 16
      %v913 = vrot.slane %v911, 1
      %v914 = vor.u32 %v909, %v913
      %915 = vrot.lane.b32.xlu0 %v914, 24
      %v916 = vpop.permute.xlu0 %915
      %v919 = vsel %vm341, %v218, %v904
      %v921 = vsel %vm366, %v919, %v907
      %v923 = vsel %vm383, %v921, %v916
      %s924 = scalar_lea.vmem %s172, 32
      %v925 = vld [vmem:[%s924] sm:$0xf]
      %v926 = vld [vmem:[%s924 + $0x4] sm:$0xf]
      %v927 = vld [vmem:[%s924 + $0x8] sm:$0xf]
      %v928 = vld [vmem:[%s924 + $0xc] sm:$0xf]
      %v930 = vunpack.c.l.b16 %v923
      %v931 = vpack.c.b16 %v414, %v413
      %v932 = vpack.c.b16 %v416, %v415
      %v933 = vpack.c.b16 %v418, %v417
      %v934 = vpack.c.b16 %v930, %v419
      %v939 = vunpack.c.l.b16 %v925
      %v940 = vunpack.c.l.b16 %v926
      %v941 = vunpack.c.l.b16 %v927
      %v942 = vunpack.c.l.b16 %v928
      %v943 = vpack.c.b16 %v940, %v939
      %v944 = vpack.c.b16 %v942, %v941
      %v948 = vsel %vm436, %v931, 0
      %v951 = vsel %vm436, %v932, 0
      %v954 = vsel %vm436, %v933, 0
      %v957 = vsel %vm436, %v934, 0
      %959 = vmatprep.subr.bf16.mxu0 0
      %960 = vmatpush1.bf16.msra.mxu0 0
      %961 = vmatprep.subr.bf16.mxu0 0
      %962 = vmatpush1.bf16.msra.mxu0 0
      %963 = vmatprep.subr.bf16.mxu0 0
      %964 = vmatpush1.bf16.msra.mxu0 0
      %965 = vmatprep.subr.bf16.mxu0 0
      %966 = vmatpush1.bf16.msra.mxu0 0
      %967 = vmatprep.subr.bf16.mxu0 0
      %968 = vmatpush1.bf16.msra.mxu0 0
      %969 = vmatprep.subr.bf16.mxu0 0
      %970 = vmatpush1.bf16.msra.mxu0 0
      %971 = vmatprep.subr.bf16.mxu0 0
      %972 = vmatpush1.bf16.msra.mxu0 %v944
      %973 = vmatprep.subr.bf16.mxu0 0
      %974 = vmatpush1.bf16.msra.mxu0 %v943
      %975 = vmatprep.subr.bf16.mxu0 0
      %976 = vmatpush2.bf16.msra.mxu0 0
      %977 = vmatprep.subr.bf16.mxu0 0
      %978 = vmatpush2.bf16.msra.mxu0 0
      %979 = vmatprep.subr.bf16.mxu0 0
      %980 = vmatpush2.bf16.msra.mxu0 0
      %981 = vmatprep.subr.bf16.mxu0 0
      %982 = vmatpush2.bf16.msra.mxu0 0
      %983 = vmatprep.subr.bf16.mxu0 0
      %984 = vmatpush2.bf16.msra.mxu0 0
      %985 = vmatprep.subr.bf16.mxu0 0
      %986 = vmatpush2.bf16.msra.mxu0 0
      %987 = vmatprep.subr.bf16.mxu0 0
      %988 = vmatpush2.bf16.msra.mxu0 0
      %989 = vmatprep.subr.bf16.mxu0 0
      %990 = vmatpush2.bf16.msra.mxu0 0
      %991 = vmatprep.mubr.bf16.mxu0 0
      %992 = vmatmul.mubr.bf16.gmra.mxu0 %v948
      %v993 = vpop.f32.mrf.mxu0
      %v994 = vadd.f32 0.0, %v993
      %v995 = vpop.f32.mrf.mxu0
      %v996 = vpop.f32.mrf.mxu0
      %v997 = vadd.f32 0.0, %v996
      %v998 = vpop.f32.mrf.mxu0
      %999 = vmatprep.mubr.bf16.mxu0 0
      %1000 = vmatmul.mubr.bf16.gmra.mxu0 %v951
      %v1001 = vpop.f32.mrf.mxu0
      %v1002 = vadd.f32 0.0, %v1001
      %v1003 = vpop.f32.mrf.mxu0
      %v1004 = vpop.f32.mrf.mxu0
      %v1005 = vadd.f32 0.0, %v1004
      %v1006 = vpop.f32.mrf.mxu0
      %1007 = vmatprep.mubr.bf16.mxu0 0
      %1008 = vmatmul.mubr.bf16.gmra.mxu0 %v954
      %v1009 = vpop.f32.mrf.mxu0
      %v1010 = vadd.f32 0.0, %v1009
      %v1011 = vpop.f32.mrf.mxu0
      %v1012 = vpop.f32.mrf.mxu0
      %v1013 = vadd.f32 0.0, %v1012
      %v1014 = vpop.f32.mrf.mxu0
      %1015 = vmatprep.mubr.bf16.mxu0 0
      %1016 = vmatmul.mubr.bf16.gmra.mxu0 %v957
      %v1017 = vpop.f32.mrf.mxu0
      %v1018 = vadd.f32 0.0, %v1017
      %v1019 = vpop.f32.mrf.mxu0
      %v1020 = vpop.f32.mrf.mxu0
      %v1021 = vadd.f32 0.0, %v1020
      %v1022 = vpop.f32.mrf.mxu0
      %1023 = vdwg.mxu0
      %v1024 = vadd.f32 %v994, %v997
      %v1025 = vadd.f32 %v1024, %v1002
      %v1026 = vadd.f32 %v1025, %v1005
      %v1027 = vadd.f32 %v1026, %v1010
      %v1028 = vadd.f32 %v1027, %v1013
      %v1029 = vadd.f32 %v1028, %v1018
      %v1030 = vadd.f32 %v1029, %v1021
      %v1031 = vrot.slane %v1030, 4
      %v1032 = vadd.f32 %v1030, %v1031
      %v1033 = vrot.slane %v1032, 2
      %v1034 = vadd.f32 %v1032, %v1033
      %v1035 = vrot.slane %v1034, 1
      %v1036 = vadd.f32 %v1034, %v1035
      %v1037 = vadd.f32 %v880, %v1036
      %v1038 = vmul.f32 %v994, %v994
      %v1039 = vmul.f32 %v997, %v997
      %v1040 = vmul.f32 %v1002, %v1002
      %v1041 = vmul.f32 %v1005, %v1005
      %v1042 = vmul.f32 %v1010, %v1010
      %v1043 = vmul.f32 %v1013, %v1013
      %v1044 = vmul.f32 %v1018, %v1018
      %v1045 = vmul.f32 %v1021, %v1021
      %v1046 = vadd.f32 %v1038, %v1039
      %v1047 = vadd.f32 %v1046, %v1040
      %v1048 = vadd.f32 %v1047, %v1041
      %v1049 = vadd.f32 %v1048, %v1042
      %v1050 = vadd.f32 %v1049, %v1043
      %v1051 = vadd.f32 %v1050, %v1044
      %v1052 = vadd.f32 %v1051, %v1045
      %v1053 = vrot.slane %v1052, 4
      %v1054 = vadd.f32 %v1052, %v1053
      %v1055 = vrot.slane %v1054, 2
      %v1056 = vadd.f32 %v1054, %v1055
      %v1057 = vrot.slane %v1056, 1
      %v1058 = vadd.f32 %v1056, %v1057
      %v1059 = vadd.f32 %v902, %v1058
      %1061 = vrot.lane.b32.xlu0 %v221, 16
      %v1062 = vpop.permute.xlu0 %1061
      %v1063 = vsel %vm341, %v219, %v904
      %v1065 = vsel %vm366, %v1063, %v1062
      %v1066 = vsel %vm383, %v1065, %v916
      %v1068 = vunpack.c.l.b16 %v1066
      %v1069 = vunpack.c.h.b16 %v1066
      %v1070 = vpack.c.b16 %v1068, %v1068
      %v1071 = vpack.c.b16 %v1069, %v1069
      %v1073 = vshrl.u32 %v1070, 16
      %v1075 = vrot.slane %v1073, 4
      %v1076 = vshll.u32 %v1070, 16
      %v1078 = vrot.slane %v1076, 5
      %v1079 = vor.u32 %v1075, %v1078
      %v1080 = vrot.slane %v1079, 4
      %v1082 = vshll.u32 %v1071, 16
      %v1084 = vrot.slane %v1082, 5
      %v1085 = vsel %vm648, %v1080, %v1084
      %s1086 = scalar_lea.vmem %s172, 48
      %v1087 = vld [vmem:[%s1086] sm:$0xf]
      %v1088 = vld [vmem:[%s1086 + $0x4] sm:$0xf]
      %v1089 = vld [vmem:[%s1086 + $0x8] sm:$0xf]
      %v1090 = vld [vmem:[%s1086 + $0xc] sm:$0xf]
      %v1091 = vunpack.c.l.b16 %v1085
      %v1092 = vpack.c.b16 %v768, %v767
      %v1093 = vpack.c.b16 %v770, %v769
      %v1094 = vpack.c.b16 %v772, %v771
      %v1095 = vpack.c.b16 %v1091, %v773
      %v1100 = vunpack.c.l.b16 %v1087
      %v1101 = vunpack.c.l.b16 %v1088
      %v1102 = vunpack.c.l.b16 %v1089
      %v1103 = vunpack.c.l.b16 %v1090
      %v1104 = vpack.c.b16 %v1101, %v1100
      %v1105 = vpack.c.b16 %v1103, %v1102
      %v1109 = vsel %vm436, %v1092, 0
      %v1112 = vsel %vm436, %v1093, 0
      %v1115 = vsel %vm436, %v1094, 0
      %v1118 = vsel %vm436, %v1095, 0
      %1120 = vmatprep.subr.bf16.mxu0 0
      %1121 = vmatpush1.bf16.msra.mxu0 0
      %1122 = vmatprep.subr.bf16.mxu0 0
      %1123 = vmatpush1.bf16.msra.mxu0 0
      %1124 = vmatprep.subr.bf16.mxu0 0
      %1125 = vmatpush1.bf16.msra.mxu0 0
      %1126 = vmatprep.subr.bf16.mxu0 0
      %1127 = vmatpush1.bf16.msra.mxu0 0
      %1128 = vmatprep.subr.bf16.mxu0 0
      %1129 = vmatpush1.bf16.msra.mxu0 0
      %1130 = vmatprep.subr.bf16.mxu0 0
      %1131 = vmatpush1.bf16.msra.mxu0 0
      %1132 = vmatprep.subr.bf16.mxu0 0
      %1133 = vmatpush1.bf16.msra.mxu0 %v1105
      %1134 = vmatprep.subr.bf16.mxu0 0
      %1135 = vmatpush1.bf16.msra.mxu0 %v1104
      %1136 = vmatprep.subr.bf16.mxu0 0
      %1137 = vmatpush2.bf16.msra.mxu0 0
      %1138 = vmatprep.subr.bf16.mxu0 0
      %1139 = vmatpush2.bf16.msra.mxu0 0
      %1140 = vmatprep.subr.bf16.mxu0 0
      %1141 = vmatpush2.bf16.msra.mxu0 0
      %1142 = vmatprep.subr.bf16.mxu0 0
      %1143 = vmatpush2.bf16.msra.mxu0 0
      %1144 = vmatprep.subr.bf16.mxu0 0
      %1145 = vmatpush2.bf16.msra.mxu0 0
      %1146 = vmatprep.subr.bf16.mxu0 0
      %1147 = vmatpush2.bf16.msra.mxu0 0
      %1148 = vmatprep.subr.bf16.mxu0 0
      %1149 = vmatpush2.bf16.msra.mxu0 0
      %1150 = vmatprep.subr.bf16.mxu0 0
      %1151 = vmatpush2.bf16.msra.mxu0 0
      %1152 = vmatprep.mubr.bf16.mxu0 0
      %1153 = vmatmul.mubr.bf16.gmra.mxu0 %v1109
      %v1154 = vpop.f32.mrf.mxu0
      %v1155 = vadd.f32 0.0, %v1154
      %v1156 = vpop.f32.mrf.mxu0
      %v1157 = vpop.f32.mrf.mxu0
      %v1158 = vadd.f32 0.0, %v1157
      %v1159 = vpop.f32.mrf.mxu0
      %1160 = vmatprep.mubr.bf16.mxu0 0
      %1161 = vmatmul.mubr.bf16.gmra.mxu0 %v1112
      %v1162 = vpop.f32.mrf.mxu0
      %v1163 = vadd.f32 0.0, %v1162
      %v1164 = vpop.f32.mrf.mxu0
      %v1165 = vpop.f32.mrf.mxu0
      %v1166 = vadd.f32 0.0, %v1165
      %v1167 = vpop.f32.mrf.mxu0
      %1168 = vmatprep.mubr.bf16.mxu0 0
      %1169 = vmatmul.mubr.bf16.gmra.mxu0 %v1115
      %v1170 = vpop.f32.mrf.mxu0
      %v1171 = vadd.f32 0.0, %v1170
      %v1172 = vpop.f32.mrf.mxu0
      %v1173 = vpop.f32.mrf.mxu0
      %v1174 = vadd.f32 0.0, %v1173
      %v1175 = vpop.f32.mrf.mxu0
      %1176 = vmatprep.mubr.bf16.mxu0 0
      %1177 = vmatmul.mubr.bf16.gmra.mxu0 %v1118
      %v1178 = vpop.f32.mrf.mxu0
      %v1179 = vadd.f32 0.0, %v1178
      %v1180 = vpop.f32.mrf.mxu0
      %v1181 = vpop.f32.mrf.mxu0
      %v1182 = vadd.f32 0.0, %v1181
      %v1183 = vpop.f32.mrf.mxu0
      %1184 = vdwg.mxu0
      %v1185 = vadd.f32 %v1155, %v1158
      %v1186 = vadd.f32 %v1185, %v1163
      %v1187 = vadd.f32 %v1186, %v1166
      %v1188 = vadd.f32 %v1187, %v1171
      %v1189 = vadd.f32 %v1188, %v1174
      %v1190 = vadd.f32 %v1189, %v1179
      %v1191 = vadd.f32 %v1190, %v1182
      %v1192 = vrot.slane %v1191, 4
      %v1193 = vadd.f32 %v1191, %v1192
      %v1194 = vrot.slane %v1193, 2
      %v1195 = vadd.f32 %v1193, %v1194
      %v1196 = vrot.slane %v1195, 1
      %v1197 = vadd.f32 %v1195, %v1196
      %v1198 = vadd.f32 %v1037, %v1197
      %v1199 = vmul.f32 %v1155, %v1155
      %v1200 = vmul.f32 %v1158, %v1158
      %v1201 = vmul.f32 %v1163, %v1163
      %v1202 = vmul.f32 %v1166, %v1166
      %v1203 = vmul.f32 %v1171, %v1171
      %v1204 = vmul.f32 %v1174, %v1174
      %v1205 = vmul.f32 %v1179, %v1179
      %v1206 = vmul.f32 %v1182, %v1182
      %v1207 = vadd.f32 %v1199, %v1200
      %v1208 = vadd.f32 %v1207, %v1201
      %v1209 = vadd.f32 %v1208, %v1202
      %v1210 = vadd.f32 %v1209, %v1203
      %v1211 = vadd.f32 %v1210, %v1204
      %v1212 = vadd.f32 %v1211, %v1205
      %v1213 = vadd.f32 %v1212, %v1206
      %v1214 = vrot.slane %v1213, 4
      %v1215 = vadd.f32 %v1213, %v1214
      %v1216 = vrot.slane %v1215, 2
      %v1217 = vadd.f32 %v1215, %v1216
      %v1218 = vrot.slane %v1217, 1
      %v1219 = vadd.f32 %v1217, %v1218
      %v1220 = vadd.f32 %v1059, %v1219
      %v1221 = vmul.f32 %v1198, 0.00390625
      %v1222 = vmul.f32 %v1220, 0.00390625
      %v1223 = vmul.f32 %v1221, %v1221
      %v1224 = vsub.f32 %v1222, %v1223
      %v1225 = vadd.f32 %v1224, 1e-05
      %v1226 = vrsqrt.pop %v1225
      %v1227 = vsub.f32 %v484, %v1221
      %v1228 = vsub.f32 %v487, %v1221
      %v1229 = vsub.f32 %v492, %v1221
      %v1230 = vsub.f32 %v495, %v1221
      %v1231 = vsub.f32 %v500, %v1221
      %v1232 = vsub.f32 %v503, %v1221
      %v1233 = vsub.f32 %v508, %v1221
      %v1234 = vsub.f32 %v511, %v1221
      %v1235 = vmul.f32 %v1227, %v1226
      %v1236 = vmul.f32 %v1228, %v1226
      %v1237 = vmul.f32 %v1229, %v1226
      %v1238 = vmul.f32 %v1230, %v1226
      %v1239 = vmul.f32 %v1231, %v1226
      %v1240 = vmul.f32 %v1232, %v1226
      %v1241 = vmul.f32 %v1233, %v1226
      %v1242 = vmul.f32 %v1234, %v1226
      %v1243 = vmax.f32 %v1235, 0.0
      %v1244 = vmax.f32 %v1236, 0.0
      %v1245 = vmax.f32 %v1237, 0.0
      %v1246 = vmax.f32 %v1238, 0.0
      %v1247 = vmax.f32 %v1239, 0.0
      %v1248 = vmax.f32 %v1240, 0.0
      %v1249 = vmax.f32 %v1241, 0.0
      %v1250 = vmax.f32 %v1242, 0.0
      %v1251 = vsub.f32 %v837, %v1221
      %v1252 = vsub.f32 %v840, %v1221
      %v1253 = vsub.f32 %v845, %v1221
      %v1254 = vsub.f32 %v848, %v1221
      %v1255 = vsub.f32 %v853, %v1221
      %v1256 = vsub.f32 %v856, %v1221
      %v1257 = vsub.f32 %v861, %v1221
      %v1258 = vsub.f32 %v864, %v1221
      %v1259 = vmul.f32 %v1251, %v1226
      %v1260 = vmul.f32 %v1252, %v1226
      %v1261 = vmul.f32 %v1253, %v1226
      %v1262 = vmul.f32 %v1254, %v1226
      %v1263 = vmul.f32 %v1255, %v1226
      %v1264 = vmul.f32 %v1256, %v1226
      %v1265 = vmul.f32 %v1257, %v1226
      %v1266 = vmul.f32 %v1258, %v1226
      %v1267 = vmax.f32 %v1259, 0.0
      %v1268 = vmax.f32 %v1260, 0.0
      %v1269 = vmax.f32 %v1261, 0.0
      %v1270 = vmax.f32 %v1262, 0.0
      %v1271 = vmax.f32 %v1263, 0.0
      %v1272 = vmax.f32 %v1264, 0.0
      %v1273 = vmax.f32 %v1265, 0.0
      %v1274 = vmax.f32 %v1266, 0.0
      %v1275 = vsub.f32 %v994, %v1221
      %v1276 = vsub.f32 %v997, %v1221
      %v1277 = vsub.f32 %v1002, %v1221
      %v1278 = vsub.f32 %v1005, %v1221
      %v1279 = vsub.f32 %v1010, %v1221
      %v1280 = vsub.f32 %v1013, %v1221
      %v1281 = vsub.f32 %v1018, %v1221
      %v1282 = vsub.f32 %v1021, %v1221
      %v1283 = vmul.f32 %v1275, %v1226
      %v1284 = vmul.f32 %v1276, %v1226
      %v1285 = vmul.f32 %v1277, %v1226
      %v1286 = vmul.f32 %v1278, %v1226
      %v1287 = vmul.f32 %v1279, %v1226
      %v1288 = vmul.f32 %v1280, %v1226
      %v1289 = vmul.f32 %v1281, %v1226
      %v1290 = vmul.f32 %v1282, %v1226
      %v1291 = vmax.f32 %v1283, 0.0
      %v1292 = vmax.f32 %v1284, 0.0
      %v1293 = vmax.f32 %v1285, 0.0
      %v1294 = vmax.f32 %v1286, 0.0
      %v1295 = vmax.f32 %v1287, 0.0
      %v1296 = vmax.f32 %v1288, 0.0
      %v1297 = vmax.f32 %v1289, 0.0
      %v1298 = vmax.f32 %v1290, 0.0
      %v1299 = vsub.f32 %v1155, %v1221
      %v1300 = vsub.f32 %v1158, %v1221
      %v1301 = vsub.f32 %v1163, %v1221
      %v1302 = vsub.f32 %v1166, %v1221
      %v1303 = vsub.f32 %v1171, %v1221
      %v1304 = vsub.f32 %v1174, %v1221
      %v1305 = vsub.f32 %v1179, %v1221
      %v1306 = vsub.f32 %v1182, %v1221
      %v1307 = vmul.f32 %v1299, %v1226
      %v1308 = vmul.f32 %v1300, %v1226
      %v1309 = vmul.f32 %v1301, %v1226
      %v1310 = vmul.f32 %v1302, %v1226
      %v1311 = vmul.f32 %v1303, %v1226
      %v1312 = vmul.f32 %v1304, %v1226
      %v1313 = vmul.f32 %v1305, %v1226
      %v1314 = vmul.f32 %v1306, %v1226
      %v1315 = vmax.f32 %v1307, 0.0
      %v1316 = vmax.f32 %v1308, 0.0
      %v1317 = vmax.f32 %v1309, 0.0
      %v1318 = vmax.f32 %v1310, 0.0
      %v1319 = vmax.f32 %v1311, 0.0
      %v1320 = vmax.f32 %v1312, 0.0
      %v1321 = vmax.f32 %v1313, 0.0
      %v1322 = vmax.f32 %v1314, 0.0
      %v1339 = vcombine.low %v1243, %v1267
      %v1340 = vcombine.high %v1243, %v1267
      %v1341 = vcombine.low %v1244, %v1268
      %v1342 = vcombine.high %v1244, %v1268
      %v1343 = vcombine.low %v1245, %v1269
      %v1344 = vcombine.high %v1245, %v1269
      %v1345 = vcombine.low %v1246, %v1270
      %v1346 = vcombine.high %v1246, %v1270
      %v1347 = vcombine.low %v1247, %v1271
      %v1348 = vcombine.high %v1247, %v1271
      %v1349 = vcombine.low %v1248, %v1272
      %v1350 = vcombine.high %v1248, %v1272
      %v1351 = vcombine.low %v1249, %v1273
      %v1352 = vcombine.high %v1249, %v1273
      %v1353 = vcombine.low %v1250, %v1274
      %v1354 = vcombine.high %v1250, %v1274
      %v1372 = vunpack.c.l.s4 1935823168
      %v1373 = vunpack.c.0.s8 %v1372
      %v1374 = vlaneseq
      %v1375 = vshrl.u32 %v1374, 7
      %v1376 = vsub.s32 %v1373, %v1375
      %v1377 = vrot.slane %v1339, %v1376
      %v1379 = vunpack.c.l.s4 1935823168
      %v1380 = vunpack.c.0.s8 %v1379
      %v1381 = vlaneseq
      %v1382 = vshrl.u32 %v1381, 7
      %v1383 = vsub.s32 %v1380, %v1382
      %v1384 = vrot.slane %v1340, %v1383
      %v1386 = vunpack.c.l.s4 1935823168
      %v1387 = vunpack.c.0.s8 %v1386
      %v1388 = vlaneseq
      %v1389 = vshrl.u32 %v1388, 7
      %v1390 = vsub.s32 %v1387, %v1389
      %v1391 = vrot.slane %v1341, %v1390
      %v1393 = vunpack.c.l.s4 1935823168
      %v1394 = vunpack.c.0.s8 %v1393
      %v1395 = vlaneseq
      %v1396 = vshrl.u32 %v1395, 7
      %v1397 = vsub.s32 %v1394, %v1396
      %v1398 = vrot.slane %v1342, %v1397
      %v1400 = vunpack.c.l.s4 1935823168
      %v1401 = vunpack.c.0.s8 %v1400
      %v1402 = vlaneseq
      %v1403 = vshrl.u32 %v1402, 7
      %v1404 = vsub.s32 %v1401, %v1403
      %v1405 = vrot.slane %v1343, %v1404
      %v1407 = vunpack.c.l.s4 1935823168
      %v1408 = vunpack.c.0.s8 %v1407
      %v1409 = vlaneseq
      %v1410 = vshrl.u32 %v1409, 7
      %v1411 = vsub.s32 %v1408, %v1410
      %v1412 = vrot.slane %v1344, %v1411
      %v1414 = vunpack.c.l.s4 1935823168
      %v1415 = vunpack.c.0.s8 %v1414
      %v1416 = vlaneseq
      %v1417 = vshrl.u32 %v1416, 7
      %v1418 = vsub.s32 %v1415, %v1417
      %v1419 = vrot.slane %v1345, %v1418
      %v1421 = vunpack.c.l.s4 1935823168
      %v1422 = vunpack.c.0.s8 %v1421
      %v1423 = vlaneseq
      %v1424 = vshrl.u32 %v1423, 7
      %v1425 = vsub.s32 %v1422, %v1424
      %v1426 = vrot.slane %v1346, %v1425
      %v1428 = vunpack.c.l.s4 1935823168
      %v1429 = vunpack.c.0.s8 %v1428
      %v1430 = vlaneseq
      %v1431 = vshrl.u32 %v1430, 7
      %v1432 = vsub.s32 %v1429, %v1431
      %v1433 = vrot.slane %v1347, %v1432
      %v1435 = vunpack.c.l.s4 1935823168
      %v1436 = vunpack.c.0.s8 %v1435
      %v1437 = vlaneseq
      %v1438 = vshrl.u32 %v1437, 7
      %v1439 = vsub.s32 %v1436, %v1438
      %v1440 = vrot.slane %v1348, %v1439
      %v1442 = vunpack.c.l.s4 1935823168
      %v1443 = vunpack.c.0.s8 %v1442
      %v1444 = vlaneseq
      %v1445 = vshrl.u32 %v1444, 7
      %v1446 = vsub.s32 %v1443, %v1445
      %v1447 = vrot.slane %v1349, %v1446
      %v1449 = vunpack.c.l.s4 1935823168
      %v1450 = vunpack.c.0.s8 %v1449
      %v1451 = vlaneseq
      %v1452 = vshrl.u32 %v1451, 7
      %v1453 = vsub.s32 %v1450, %v1452
      %v1454 = vrot.slane %v1350, %v1453
      %v1456 = vunpack.c.l.s4 1935823168
      %v1457 = vunpack.c.0.s8 %v1456
      %v1458 = vlaneseq
      %v1459 = vshrl.u32 %v1458, 7
      %v1460 = vsub.s32 %v1457, %v1459
      %v1461 = vrot.slane %v1351, %v1460
      %v1463 = vunpack.c.l.s4 1935823168
      %v1464 = vunpack.c.0.s8 %v1463
      %v1465 = vlaneseq
      %v1466 = vshrl.u32 %v1465, 7
      %v1467 = vsub.s32 %v1464, %v1466
      %v1468 = vrot.slane %v1352, %v1467
      %v1470 = vunpack.c.l.s4 1935823168
      %v1471 = vunpack.c.0.s8 %v1470
      %v1472 = vlaneseq
      %v1473 = vshrl.u32 %v1472, 7
      %v1474 = vsub.s32 %v1471, %v1473
      %v1475 = vrot.slane %v1353, %v1474
      %v1477 = vunpack.c.l.s4 1935823168
      %v1478 = vunpack.c.0.s8 %v1477
      %v1479 = vlaneseq
      %v1480 = vshrl.u32 %v1479, 7
      %v1481 = vsub.s32 %v1478, %v1480
      %v1482 = vrot.slane %v1354, %v1481
      %v1499 = vcombine.low %v1291, %v1315
      %v1500 = vcombine.high %v1291, %v1315
      %v1501 = vcombine.low %v1292, %v1316
      %v1502 = vcombine.high %v1292, %v1316
      %v1503 = vcombine.low %v1293, %v1317
      %v1504 = vcombine.high %v1293, %v1317
      %v1505 = vcombine.low %v1294, %v1318
      %v1506 = vcombine.high %v1294, %v1318
      %v1507 = vcombine.low %v1295, %v1319
      %v1508 = vcombine.high %v1295, %v1319
      %v1509 = vcombine.low %v1296, %v1320
      %v1510 = vcombine.high %v1296, %v1320
      %v1511 = vcombine.low %v1297, %v1321
      %v1512 = vcombine.high %v1297, %v1321
      %v1513 = vcombine.low %v1298, %v1322
      %v1514 = vcombine.high %v1298, %v1322
      %v1532 = vunpack.c.l.s4 1935823168
      %v1533 = vunpack.c.0.s8 %v1532
      %v1534 = vlaneseq
      %v1535 = vshrl.u32 %v1534, 7
      %v1536 = vsub.s32 %v1533, %v1535
      %v1537 = vrot.slane %v1499, %v1536
      %v1539 = vunpack.c.l.s4 1935823168
      %v1540 = vunpack.c.0.s8 %v1539
      %v1541 = vlaneseq
      %v1542 = vshrl.u32 %v1541, 7
      %v1543 = vsub.s32 %v1540, %v1542
      %v1544 = vrot.slane %v1500, %v1543
      %v1546 = vunpack.c.l.s4 1935823168
      %v1547 = vunpack.c.0.s8 %v1546
      %v1548 = vlaneseq
      %v1549 = vshrl.u32 %v1548, 7
      %v1550 = vsub.s32 %v1547, %v1549
      %v1551 = vrot.slane %v1501, %v1550
      %v1553 = vunpack.c.l.s4 1935823168
      %v1554 = vunpack.c.0.s8 %v1553
      %v1555 = vlaneseq
      %v1556 = vshrl.u32 %v1555, 7
      %v1557 = vsub.s32 %v1554, %v1556
      %v1558 = vrot.slane %v1502, %v1557
      %v1560 = vunpack.c.l.s4 1935823168
      %v1561 = vunpack.c.0.s8 %v1560
      %v1562 = vlaneseq
      %v1563 = vshrl.u32 %v1562, 7
      %v1564 = vsub.s32 %v1561, %v1563
      %v1565 = vrot.slane %v1503, %v1564
      %v1567 = vunpack.c.l.s4 1935823168
      %v1568 = vunpack.c.0.s8 %v1567
      %v1569 = vlaneseq
      %v1570 = vshrl.u32 %v1569, 7
      %v1571 = vsub.s32 %v1568, %v1570
      %v1572 = vrot.slane %v1504, %v1571
      %v1574 = vunpack.c.l.s4 1935823168
      %v1575 = vunpack.c.0.s8 %v1574
      %v1576 = vlaneseq
      %v1577 = vshrl.u32 %v1576, 7
      %v1578 = vsub.s32 %v1575, %v1577
      %v1579 = vrot.slane %v1505, %v1578
      %v1581 = vunpack.c.l.s4 1935823168
      %v1582 = vunpack.c.0.s8 %v1581
      %v1583 = vlaneseq
      %v1584 = vshrl.u32 %v1583, 7
      %v1585 = vsub.s32 %v1582, %v1584
      %v1586 = vrot.slane %v1506, %v1585
      %v1588 = vunpack.c.l.s4 1935823168
      %v1589 = vunpack.c.0.s8 %v1588
      %v1590 = vlaneseq
      %v1591 = vshrl.u32 %v1590, 7
      %v1592 = vsub.s32 %v1589, %v1591
      %v1593 = vrot.slane %v1507, %v1592
      %v1595 = vunpack.c.l.s4 1935823168
      %v1596 = vunpack.c.0.s8 %v1595
      %v1597 = vlaneseq
      %v1598 = vshrl.u32 %v1597, 7
      %v1599 = vsub.s32 %v1596, %v1598
      %v1600 = vrot.slane %v1508, %v1599
      %v1602 = vunpack.c.l.s4 1935823168
      %v1603 = vunpack.c.0.s8 %v1602
      %v1604 = vlaneseq
      %v1605 = vshrl.u32 %v1604, 7
      %v1606 = vsub.s32 %v1603, %v1605
      %v1607 = vrot.slane %v1509, %v1606
      %v1609 = vunpack.c.l.s4 1935823168
      %v1610 = vunpack.c.0.s8 %v1609
      %v1611 = vlaneseq
      %v1612 = vshrl.u32 %v1611, 7
      %v1613 = vsub.s32 %v1610, %v1612
      %v1614 = vrot.slane %v1510, %v1613
      %v1616 = vunpack.c.l.s4 1935823168
      %v1617 = vunpack.c.0.s8 %v1616
      %v1618 = vlaneseq
      %v1619 = vshrl.u32 %v1618, 7
      %v1620 = vsub.s32 %v1617, %v1619
      %v1621 = vrot.slane %v1511, %v1620
      %v1623 = vunpack.c.l.s4 1935823168
      %v1624 = vunpack.c.0.s8 %v1623
      %v1625 = vlaneseq
      %v1626 = vshrl.u32 %v1625, 7
      %v1627 = vsub.s32 %v1624, %v1626
      %v1628 = vrot.slane %v1512, %v1627
      %v1630 = vunpack.c.l.s4 1935823168
      %v1631 = vunpack.c.0.s8 %v1630
      %v1632 = vlaneseq
      %v1633 = vshrl.u32 %v1632, 7
      %v1634 = vsub.s32 %v1631, %v1633
      %v1635 = vrot.slane %v1513, %v1634
      %v1637 = vunpack.c.l.s4 1935823168
      %v1638 = vunpack.c.0.s8 %v1637
      %v1639 = vlaneseq
      %v1640 = vshrl.u32 %v1639, 7
      %v1641 = vsub.s32 %v1638, %v1640
      %v1642 = vrot.slane %v1514, %v1641
      %v1643 = vpack.c.bf16 %v1384, %v1377
      %v1644 = vpack.c.bf16 %v1544, %v1537
      %v1645 = vpack.c.bf16 %v1398, %v1391
      %v1646 = vpack.c.bf16 %v1558, %v1551
      %v1647 = vpack.c.bf16 %v1412, %v1405
      %v1648 = vpack.c.bf16 %v1572, %v1565
      %v1649 = vpack.c.bf16 %v1426, %v1419
      %v1650 = vpack.c.bf16 %v1586, %v1579
      %v1651 = vpack.c.bf16 %v1440, %v1433
      %v1652 = vpack.c.bf16 %v1600, %v1593
      %v1653 = vpack.c.bf16 %v1454, %v1447
      %v1654 = vpack.c.bf16 %v1614, %v1607
      %v1655 = vpack.c.bf16 %v1468, %v1461
      %v1656 = vpack.c.bf16 %v1628, %v1621
      %v1657 = vpack.c.bf16 %v1482, %v1475
      %v1658 = vpack.c.bf16 %v1642, %v1635
      %v1675 = vunpack.c.l.b16 %v1643
      %v1676 = vunpack.c.h.b16 %v1643
      %v1677 = vunpack.c.l.b16 %v1644
      %v1678 = vunpack.c.h.b16 %v1644
      %v1679 = vunpack.c.l.b16 %v1645
      %v1680 = vunpack.c.h.b16 %v1645
      %v1681 = vunpack.c.l.b16 %v1646
      %v1682 = vunpack.c.h.b16 %v1646
      %v1683 = vunpack.c.l.b16 %v1647
      %v1684 = vunpack.c.h.b16 %v1647
      %v1685 = vunpack.c.l.b16 %v1648
      %v1686 = vunpack.c.h.b16 %v1648
      %v1687 = vunpack.c.l.b16 %v1649
      %v1688 = vunpack.c.h.b16 %v1649
      %v1689 = vunpack.c.l.b16 %v1650
      %v1690 = vunpack.c.h.b16 %v1650
      %v1691 = vunpack.c.l.b16 %v1651
      %v1692 = vunpack.c.h.b16 %v1651
      %v1693 = vunpack.c.l.b16 %v1652
      %v1694 = vunpack.c.h.b16 %v1652
      %v1695 = vunpack.c.l.b16 %v1653
      %v1696 = vunpack.c.h.b16 %v1653
      %v1697 = vunpack.c.l.b16 %v1654
      %v1698 = vunpack.c.h.b16 %v1654
      %v1699 = vunpack.c.l.b16 %v1655
      %v1700 = vunpack.c.h.b16 %v1655
      %v1701 = vunpack.c.l.b16 %v1656
      %v1702 = vunpack.c.h.b16 %v1656
      %v1703 = vunpack.c.l.b16 %v1657
      %v1704 = vunpack.c.h.b16 %v1657
      %v1705 = vunpack.c.l.b16 %v1658
      %v1706 = vunpack.c.h.b16 %v1658
      %v1707 = vpack.c.b16 %v1675, %v1675
      %v1708 = vpack.c.b16 %v1676, %v1676
      %v1709 = vpack.c.b16 %v1677, %v1677
      %v1710 = vpack.c.b16 %v1678, %v1678
      %v1711 = vpack.c.b16 %v1679, %v1679
      %v1712 = vpack.c.b16 %v1680, %v1680
      %v1713 = vpack.c.b16 %v1681, %v1681
      %v1714 = vpack.c.b16 %v1682, %v1682
      %v1715 = vpack.c.b16 %v1683, %v1683
      %v1716 = vpack.c.b16 %v1684, %v1684
      %v1717 = vpack.c.b16 %v1685, %v1685
      %v1718 = vpack.c.b16 %v1686, %v1686
      %v1719 = vpack.c.b16 %v1687, %v1687
      %v1720 = vpack.c.b16 %v1688, %v1688
      %v1721 = vpack.c.b16 %v1689, %v1689
      %v1722 = vpack.c.b16 %v1690, %v1690
      %v1723 = vpack.c.b16 %v1691, %v1691
      %v1724 = vpack.c.b16 %v1692, %v1692
      %v1725 = vpack.c.b16 %v1693, %v1693
      %v1726 = vpack.c.b16 %v1694, %v1694
      %v1727 = vpack.c.b16 %v1695, %v1695
      %v1728 = vpack.c.b16 %v1696, %v1696
      %v1729 = vpack.c.b16 %v1697, %v1697
      %v1730 = vpack.c.b16 %v1698, %v1698
      %v1731 = vpack.c.b16 %v1699, %v1699
      %v1732 = vpack.c.b16 %v1700, %v1700
      %v1733 = vpack.c.b16 %v1701, %v1701
      %v1734 = vpack.c.b16 %v1702, %v1702
      %v1735 = vpack.c.b16 %v1703, %v1703
      %v1736 = vpack.c.b16 %v1704, %v1704
      %v1737 = vpack.c.b16 %v1705, %v1705
      %v1738 = vpack.c.b16 %v1706, %v1706
      %1771 = vst [vmem:[%s180] sm:$0xf] %v1707
      %1772 = vst [vmem:[%s180 + $0x4] sm:$0xf] %v1708
      %1773 = vst [vmem:[%s180 + $0x8] sm:$0xf] %v1709
      %1774 = vst [vmem:[%s180 + $0xc] sm:$0xf] %v1710
      %1775 = vst [vmem:[%s180 + $0x10] sm:$0xf] %v1711
      %1776 = vst [vmem:[%s180 + $0x14] sm:$0xf] %v1712
      %1777 = vst [vmem:[%s180 + $0x18] sm:$0xf] %v1713
      %1778 = vst [vmem:[%s180 + $0x1c] sm:$0xf] %v1714
      %1779 = vst [vmem:[%s180 + $0x20] sm:$0xf] %v1715
      %1780 = vst [vmem:[%s180 + $0x24] sm:$0xf] %v1716
      %1781 = vst [vmem:[%s180 + $0x28] sm:$0xf] %v1717
      %1782 = vst [vmem:[%s180 + $0x2c] sm:$0xf] %v1718
      %1783 = vst [vmem:[%s180 + $0x30] sm:$0xf] %v1719
      %1784 = vst [vmem:[%s180 + $0x34] sm:$0xf] %v1720
      %1785 = vst [vmem:[%s180 + $0x38] sm:$0xf] %v1721
      %1786 = vst [vmem:[%s180 + $0x3c] sm:$0xf] %v1722
      %1787 = vst [vmem:[%s180 + $0x40] sm:$0xf] %v1723
      %1788 = vst [vmem:[%s180 + $0x44] sm:$0xf] %v1724
      %1789 = vst [vmem:[%s180 + $0x48] sm:$0xf] %v1725
      %1790 = vst [vmem:[%s180 + $0x4c] sm:$0xf] %v1726
      %1791 = vst [vmem:[%s180 + $0x50] sm:$0xf] %v1727
      %1792 = vst [vmem:[%s180 + $0x54] sm:$0xf] %v1728
      %1793 = vst [vmem:[%s180 + $0x58] sm:$0xf] %v1729
      %1794 = vst [vmem:[%s180 + $0x5c] sm:$0xf] %v1730
      %1795 = vst [vmem:[%s180 + $0x60] sm:$0xf] %v1731
      %1796 = vst [vmem:[%s180 + $0x64] sm:$0xf] %v1732
      %1797 = vst [vmem:[%s180 + $0x68] sm:$0xf] %v1733
      %1798 = vst [vmem:[%s180 + $0x6c] sm:$0xf] %v1734
      %1799 = vst [vmem:[%s180 + $0x70] sm:$0xf] %v1735
      %1800 = vst [vmem:[%s180 + $0x74] sm:$0xf] %v1736
      %1801 = vst [vmem:[%s180 + $0x78] sm:$0xf] %v1737
      %1802 = vst [vmem:[%s180 + $0x7c] sm:$0xf] %v1738
      %p1803 = scmp.lt.s32.totalorder %s17, 1
      %s1804 = scalar_select %p1803, %s17, 1
      %p1805 = scmp.lt.s32.totalorder %s18, 0
      %s1806 = scalar_select %p1805, %s18, 0
      %s1807 = smul.addr %s1804, 32
      %s1808 = sadd.s32 %s1806, %s1807
      %s1809 = smul.addr %s1808, 4
      %s1810 = scalar_lea.vmem %s2, %s1809
      // Predicated region
      $region29: #{unet_up_forward.1} parent=27 // pred_check
        %p1811 = pneg %p97
      $region30: #{unet_up_forward.1} parent=27 // pred_check_branch
        %1813 = sbr.rel (%p1811) target = $region32
      $region31: #{unet_up_forward.1} parent=27 // pred_region
        _
      $region32: #{unet_up_forward.1} parent=27 // pred_fallthru
        _
    $region28: #{unet_up_forward.1} parent=5 // pred_fallthru
      _
    %p1814 = scmp.le.s32.totalorder 2, %s8
    // Predicated region
    $region33: #{unet_up_forward.1} parent=5 // pred_check
      %p1815 = pneg %p1814
    $region34: #{unet_up_forward.1} parent=5 // pred_check_branch
      %1817 = sbr.rel (%p1815) target = $region36
    $region35: #{unet_up_forward.1} parent=5 // pred_region
      %s1818 = ssub.s32 %s8, 2
      // Predicated region
      $region37: #{unet_up_forward.1} parent=35 // pred_check
        %p1819 = pneg %p103
      $region38: #{unet_up_forward.1} parent=35 // pred_check_branch
        %1821 = sbr.rel (%p1819) target = $region40
      $region39: #{unet_up_forward.1} parent=35 // pred_region
        %p1822 = scmp.lt.s32.totalorder %s19, 1
        %s1823 = scalar_select %p1822, %s19, 1
        %p1824 = scmp.lt.s32.totalorder %s20, 0
        %s1825 = scalar_select %p1824, %s20, 0
        %s1826 = smul.addr %s1823, 32
        %s1827 = sadd.s32 %s1825, %s1826
        %s1828 = smul.addr %s1827, 4
        %s1829 = scalar_lea.vmem %s2, %s1828
      $region40: #{unet_up_forward.1} parent=35 // pred_fallthru
        _
    $region36: #{unet_up_forward.1} parent=5 // pred_fallthru
      _
  $region6: #{unet_up_forward.1} parent=0 // loop_footer
    %s12 = sadd.s32 1, %s8
  $region7: #{unet_up_forward.1} parent=0 // loop_footer_branch
    %7 = sbr.rel target = $region3
  $region8: #{unet_up_forward.1} parent=0 // loop_exit
    _

</llo_original>
